<compile_context>
chip_gen: v6e
topology: v6e:2x2x1
jax: 0.10.0
libtpu: 0.0.40
codegen_flags: <defaults>
</compile_context>

<pallas_src>
import jax
import jax.numpy as jnp
from jax.experimental import pallas as pl
from jax.experimental.pallas import tpu as pltpu


# ----------------------------------------------------------------------------
# Kernel: one grid step == one block of `bt` batch elements (bt*f2 rows at once).
# ----------------------------------------------------------------------------
def relation_kernel(x_ref, mask_ref,
                    w1_ref, b1_ref, w2_ref, b2_ref, w3_ref, b3_ref, w4_ref, b4_ref,
                    wf1_ref, bf1_ref, wf2_ref, bf2_ref, wf3_ref, bf3_ref,
                    out_ref):
    _, rows, _ = x_ref.shape                      # (1, bt*f2, din_pad)
    bt = mask_ref.shape[1]
    f2 = rows // bt
    hidden = w1_ref.shape[1]
    cdt = w1_ref.dtype                            # matmul input dtype (bf16 default)

    x = x_ref[0]                                  # already compute dtype (pre-cast)

    # ---- g-stack: relu(g1) -> relu(g2) -> relu(g3); bf16 MXU, f32 accum -----
    h = jnp.dot(x, w1_ref[...], preferred_element_type=jnp.float32) + b1_ref[...]
    h = jnp.maximum(h, 0.0)
    h = jnp.dot(h.astype(cdt), w2_ref[...], preferred_element_type=jnp.float32) + b2_ref[...]
    h = jnp.maximum(h, 0.0)
    h = jnp.dot(h.astype(cdt), w3_ref[...], preferred_element_type=jnp.float32) + b3_ref[...]
    h = jnp.maximum(h, 0.0)

    # ---- per-batch sum over featuresize**2, with the (linear) g4 hoisted ----
    # sum_i (h3_i @ w4 + b4) == (sum_i h3_i) @ w4 + f2 * b4
    # TODO(synk): for odd f2 (e.g. featuresize=25) this sublane-group reduce may
    # force a relayout; a strided per-slab accumulation would avoid it.
    s3 = h.reshape(bt, f2, hidden).sum(axis=1)    # (bt, 256) f32
    s = (jnp.dot(s3.astype(cdt), w4_ref[...], preferred_element_type=jnp.float32)
         + jnp.float32(f2) * b4_ref[...])

    # ---- applyF on the whole (bt, 256) block --------------------------------
    f = jnp.dot(s.astype(cdt), wf1_ref[...], preferred_element_type=jnp.float32) + bf1_ref[...]
    f = jnp.maximum(f, 0.0)
    f = jnp.dot(f.astype(cdt), wf2_ref[...], preferred_element_type=jnp.float32) + bf2_ref[...]
    # F.relu(F.dropout(., p=0.5)); mask carries the 1/(1-p)=2 inverted-dropout scale.
    f = jnp.maximum(f * mask_ref[0], 0.0)
    out = jnp.dot(f.astype(cdt), wf3_ref[...], preferred_element_type=jnp.float32) + bf3_ref[...]
    out_ref[0] = out.astype(out_ref.dtype)


# ----------------------------------------------------------------------------
# Wrapper
# ----------------------------------------------------------------------------
def _round_up(x, m):
    return ((x + m - 1) // m) * m


def _choose_batch_block(batchsize, f2, target_rows=4096):
    """Batch block so bt*f2 <= target_rows (batch is zero-padded to a multiple)."""
    return max(1, min(batchsize, target_rows // max(f2, 1)))


def _dropout_mask(key, batchsize, hidden, training):
    # TODO(synk): torch's RNG stream cannot be reproduced bit-exactly; mask uses jax.random.
    if not training:
        return jnp.ones((batchsize, hidden), jnp.float32)
    keep = jax.random.bernoulli(key, 0.5, (batchsize, hidden))
    return keep.astype(jnp.float32) * 2.0          # inverted dropout, p=0.5


def relation_module_forward(x, params, batchsize, featuresize, *,
                            rng_key=None, training=True,
                            compute_dtype=jnp.bfloat16, batch_block=None,
                            target_rows=4096):
    """x: (batchsize*featuresize**2, Din) float32 -> (batchsize, output_dim)."""
    din = x.shape[-1]
    f2 = featuresize * featuresize
    hidden = params["w1"].shape[1]
    out_dim = params["wf3"].shape[1]

    # Layout plumbing: lane-dense K for the first matmul, lane-dense output.
    din_pad = _round_up(din, 128)
    out_pad = _round_up(out_dim, 128)

    bt = batch_block if batch_block is not None else _choose_batch_block(
        batchsize, f2, target_rows)
    g = -(-batchsize // bt)                        # ceil-div: number of grid steps
    b_pad = g * bt                                 # batch padded with zero rows
    rows = bt * f2

    x_p = jnp.pad(x.astype(jnp.float32),
                  ((0, (b_pad - batchsize) * f2), (0, din_pad - din)))
    x_p = x_p.astype(compute_dtype).reshape(g, rows, din_pad)

    if rng_key is None:
        rng_key = jax.random.PRNGKey(0)
    mask = _dropout_mask(rng_key, batchsize, hidden, training)
    mask = jnp.pad(mask, ((0, b_pad - batchsize), (0, 0)), constant_values=1.0)
    mask = mask.astype(compute_dtype).reshape(g, bt, hidden)

    w1 = jnp.pad(params["w1"], ((0, din_pad - din), (0, 0))).astype(compute_dtype)
    wf3 = jnp.pad(params["wf3"], ((0, 0), (0, out_pad - out_dim))).astype(compute_dtype)
    bf3 = jnp.pad(params["bf3"], ((0, 0), (0, out_pad - out_dim))).astype(jnp.float32)

    ws = [w1, params["b1"].astype(jnp.float32),
          params["w2"].astype(compute_dtype), params["b2"].astype(jnp.float32),
          params["w3"].astype(compute_dtype), params["b3"].astype(jnp.float32),
          params["w4"].astype(compute_dtype), params["b4"].astype(jnp.float32),
          params["wf1"].astype(compute_dtype), params["bf1"].astype(jnp.float32),
          params["wf2"].astype(compute_dtype), params["bf2"].astype(jnp.float32),
          wf3, bf3]

    in_specs = [
        pl.BlockSpec((1, rows, din_pad), lambda i: (i, 0, 0)),   # x block
        pl.BlockSpec((1, bt, hidden), lambda i: (i, 0, 0)),      # dropout mask block
    ]
    for w in ws:
        # Full-array, grid-invariant blocks: weights stay VMEM-resident.
        # TODO(synk): pipeline_mode=pl.Buffered(1) would halve weight VMEM (v7x);
        # left at the default double-buffering for portability.
        in_specs.append(pl.BlockSpec(w.shape, lambda i: (0, 0)))

    out = pl.pallas_call(
        relation_kernel,
        out_shape=jax.ShapeDtypeStruct((g, bt, out_pad), jnp.float32),
        grid=(g,),
        in_specs=in_specs,
        out_specs=pl.BlockSpec((1, bt, out_pad), lambda i: (i, 0, 0)),
        compiler_params=pltpu.CompilerParams(
            dimension_semantics=("parallel",),     # batch blocks are independent
            vmem_limit_bytes=48 * 1024 * 1024),
    )(x_p, mask, *ws)

    return out.reshape(b_pad, out_pad)[:batchsize, :out_dim]


# ----------------------------------------------------------------------------
# Pure-JAX reference (same dropout mask, same bf16-matmul/f32-accum precision,
# but NO w4 hoist -> mirrors the torch op order) for a correctness check.
# ----------------------------------------------------------------------------
def relation_reference(x, params, batchsize, featuresize, mask,
                       compute_dtype=jnp.bfloat16):
    cdt = compute_dtype

    def lin(h, w, b):
        return jnp.dot(h.astype(cdt), w.astype(cdt),
                       preferred_element_type=jnp.float32) + b

    h = jax.nn.relu(lin(x, params["w1"], params["b1"]))
    h = jax.nn.relu(lin(h, params["w2"], params["b2"]))
    h = jax.nn.relu(lin(h, params["w3"], params["b3"]))
    h = lin(h, params["w4"], params["b4"])
    s = h.reshape(batchsize, featuresize * featuresize, -1).sum(axis=1)
    f = jax.nn.relu(lin(s, params["wf1"], params["bf1"]))
    f = jax.nn.relu(lin(f, params["wf2"], params["bf2"]) * mask)
    return lin(f, params["wf3"], params["bf3"])


# ----------------------------------------------------------------------------
# Parameter construction (PyTorch nn.Linear default init; weights stored (in, out))
# ----------------------------------------------------------------------------
def init_linear(key, in_dim, out_dim):
    kw, kb = jax.random.split(key)
    bound = 1.0 / float(jnp.sqrt(jnp.float32(in_dim)))
    w = jax.random.uniform(kw, (in_dim, out_dim), jnp.float32, -bound, bound)
    b = jax.random.uniform(kb, (1, out_dim), jnp.float32, -bound, bound)
    return w, b


def make_params(key, qst_dim=10, output_dim=32, depth_dim=24, hidden=256):
    din = 2 * depth_dim + qst_dim
    keys = jax.random.split(key, 7)
    params = {}
    params["w1"], params["b1"] = init_linear(keys[0], din, hidden)
    params["w2"], params["b2"] = init_linear(keys[1], hidden, hidden)
    params["w3"], params["b3"] = init_linear(keys[2], hidden, hidden)
    params["w4"], params["b4"] = init_linear(keys[3], hidden, hidden)
    params["wf1"], params["bf1"] = init_linear(keys[4], hidden, hidden)
    params["wf2"], params["bf2"] = init_linear(keys[5], hidden, hidden)
    params["wf3"], params["bf3"] = init_linear(keys[6], hidden, output_dim)
    # NOTE: gln1..gln3 LayerNorm params exist in __init__ but are unused in the
    # default (linearNormalization=False) forward path, so they are omitted.
    return params


if __name__ == "__main__":
    qst_dim, output_dim, depth_dim = 10, 32, 24
    batchsize, featuresize = 2, 4                      # small test shapes
    din = 2 * depth_dim + qst_dim                      # 58
    n_rows = batchsize * featuresize * featuresize     # 32

    key = jax.random.PRNGKey(0)
    kx, kp, kd = jax.random.split(key, 3)
    x = jax.random.normal(kx, (n_rows, din), dtype=jnp.float32)
    params = make_params(kp, qst_dim=qst_dim, output_dim=output_dim, depth_dim=depth_dim)

    out = relation_module_forward(x, params, batchsize, featuresize,
                                  rng_key=kd, training=True)
    jax.block_until_ready(out)
    assert out.shape == (batchsize, output_dim)

    # Sanity check against a pure-JAX reference using the same dropout mask and
    # the same bf16-matmul / f32-accumulation precision (no w4 hoist).
    mask = _dropout_mask(kd, batchsize, 256, training=True)
    ref = relation_reference(x, params, batchsize, featuresize, mask)
    assert jnp.max(jnp.abs(out - ref)) < 2e-2, "kernel does not match reference"

    print("KERNEL_OK")
</pallas_src>

<mosaic_0001>
module attributes {stable_mosaic.version = 11 : i64} {
  func.func @relation_kernel(%arg0: i32, %arg1: memref<1x32x128xbf16, #tpu.memory_space<vmem>>, %arg2: memref<1x2x256xbf16, #tpu.memory_space<vmem>>, %arg3: memref<128x256xbf16, #tpu.memory_space<vmem>>, %arg4: memref<1x256xf32, #tpu.memory_space<vmem>>, %arg5: memref<256x256xbf16, #tpu.memory_space<vmem>>, %arg6: memref<1x256xf32, #tpu.memory_space<vmem>>, %arg7: memref<256x256xbf16, #tpu.memory_space<vmem>>, %arg8: memref<1x256xf32, #tpu.memory_space<vmem>>, %arg9: memref<256x256xbf16, #tpu.memory_space<vmem>>, %arg10: memref<1x256xf32, #tpu.memory_space<vmem>>, %arg11: memref<256x256xbf16, #tpu.memory_space<vmem>>, %arg12: memref<1x256xf32, #tpu.memory_space<vmem>>, %arg13: memref<256x256xbf16, #tpu.memory_space<vmem>>, %arg14: memref<1x256xf32, #tpu.memory_space<vmem>>, %arg15: memref<256x128xbf16, #tpu.memory_space<vmem>>, %arg16: memref<1x128xf32, #tpu.memory_space<vmem>>, %arg17: memref<1x2x128xf32, #tpu.memory_space<vmem>>) attributes {dimension_semantics = [#tpu.dimension_semantics<parallel>], iteration_bounds = array<i64: 1>, scalar_prefetch = 0 : i64, scratch_operands = 0 : i64, tpu.core_type = #tpu.core_type<tc>, window_params = [{transform_indices = @transform_0, window_bounds = array<i64: 1, 32, 128>}, {transform_indices = @transform_1, window_bounds = array<i64: 1, 2, 256>}, {pipeline_mode = #tpu.pipeline_mode<synchronous>, transform_indices = @transform_2, window_bounds = array<i64: 128, 256>}, {pipeline_mode = #tpu.pipeline_mode<synchronous>, transform_indices = @transform_3, window_bounds = array<i64: 1, 256>}, {pipeline_mode = #tpu.pipeline_mode<synchronous>, transform_indices = @transform_4, window_bounds = array<i64: 256, 256>}, {pipeline_mode = #tpu.pipeline_mode<synchronous>, transform_indices = @transform_5, window_bounds = array<i64: 1, 256>}, {pipeline_mode = #tpu.pipeline_mode<synchronous>, transform_indices = @transform_6, window_bounds = array<i64: 256, 256>}, {pipeline_mode = #tpu.pipeline_mode<synchronous>, transform_indices = @transform_7, window_bounds = array<i64: 1, 256>}, {pipeline_mode = #tpu.pipeline_mode<synchronous>, transform_indices = @transform_8, window_bounds = array<i64: 256, 256>}, {pipeline_mode = #tpu.pipeline_mode<synchronous>, transform_indices = @transform_9, window_bounds = array<i64: 1, 256>}, {pipeline_mode = #tpu.pipeline_mode<synchronous>, transform_indices = @transform_10, window_bounds = array<i64: 256, 256>}, {pipeline_mode = #tpu.pipeline_mode<synchronous>, transform_indices = @transform_11, window_bounds = array<i64: 1, 256>}, {pipeline_mode = #tpu.pipeline_mode<synchronous>, transform_indices = @transform_12, window_bounds = array<i64: 256, 256>}, {pipeline_mode = #tpu.pipeline_mode<synchronous>, transform_indices = @transform_13, window_bounds = array<i64: 1, 256>}, {pipeline_mode = #tpu.pipeline_mode<synchronous>, transform_indices = @transform_14, window_bounds = array<i64: 256, 128>}, {pipeline_mode = #tpu.pipeline_mode<synchronous>, transform_indices = @transform_15, window_bounds = array<i64: 1, 128>}, {transform_indices = @transform_16, window_bounds = array<i64: 1, 2, 128>}]} {
    %c0 = arith.constant 0 : index
    %c0_0 = arith.constant 0 : index
    %c0_1 = arith.constant 0 : index
    %0 = vector.load %arg1[%c0, %c0_0, %c0_1] : memref<1x32x128xbf16, #tpu.memory_space<vmem>>, vector<1x32x128xbf16>
    %1 = vector.shape_cast %0 : vector<1x32x128xbf16> to vector<32x128xbf16>
    %c0_2 = arith.constant 0 : index
    %c0_3 = arith.constant 0 : index
    %2 = vector.load %arg3[%c0_2, %c0_3] : memref<128x256xbf16, #tpu.memory_space<vmem>>, vector<128x256xbf16>
    %cst = arith.constant dense<0.000000e+00> : vector<32x256xf32>
    %3 = tpu.matmul %1, %2, %cst {dimension_numbers = #tpu.dot_dimension_numbers<[1], [0], [0], [1], [0, 0, 1, 1], [], []>} : vector<32x128xbf16>, vector<128x256xbf16>, vector<32x256xf32> -> vector<32x256xf32>
    %c0_4 = arith.constant 0 : index
    %c0_5 = arith.constant 0 : index
    %4 = vector.load %arg4[%c0_4, %c0_5] : memref<1x256xf32, #tpu.memory_space<vmem>>, vector<1x256xf32>
    %5 = vector.broadcast %4 : vector<1x256xf32> to vector<32x256xf32>
    %6 = arith.addf %3, %5 : vector<32x256xf32>
    %cst_6 = arith.constant 0.000000e+00 : f32
    %7 = vector.broadcast %cst_6 : f32 to vector<32x256xf32>
    %8 = arith.maximumf %6, %7 : vector<32x256xf32>
    %9 = arith.truncf %8 : vector<32x256xf32> to vector<32x256xbf16>
    %c0_7 = arith.constant 0 : index
    %c0_8 = arith.constant 0 : index
    %10 = vector.load %arg5[%c0_7, %c0_8] : memref<256x256xbf16, #tpu.memory_space<vmem>>, vector<256x256xbf16>
    %cst_9 = arith.constant dense<0.000000e+00> : vector<32x256xf32>
    %11 = tpu.matmul %9, %10, %cst_9 {dimension_numbers = #tpu.dot_dimension_numbers<[1], [0], [0], [1], [0, 0, 1, 1], [], []>} : vector<32x256xbf16>, vector<256x256xbf16>, vector<32x256xf32> -> vector<32x256xf32>
    %c0_10 = arith.constant 0 : index
    %c0_11 = arith.constant 0 : index
    %12 = vector.load %arg6[%c0_10, %c0_11] : memref<1x256xf32, #tpu.memory_space<vmem>>, vector<1x256xf32>
    %13 = vector.broadcast %12 : vector<1x256xf32> to vector<32x256xf32>
    %14 = arith.addf %11, %13 : vector<32x256xf32>
    %cst_12 = arith.constant 0.000000e+00 : f32
    %15 = vector.broadcast %cst_12 : f32 to vector<32x256xf32>
    %16 = arith.maximumf %14, %15 : vector<32x256xf32>
    %17 = arith.truncf %16 : vector<32x256xf32> to vector<32x256xbf16>
    %c0_13 = arith.constant 0 : index
    %c0_14 = arith.constant 0 : index
    %18 = vector.load %arg7[%c0_13, %c0_14] : memref<256x256xbf16, #tpu.memory_space<vmem>>, vector<256x256xbf16>
    %cst_15 = arith.constant dense<0.000000e+00> : vector<32x256xf32>
    %19 = tpu.matmul %17, %18, %cst_15 {dimension_numbers = #tpu.dot_dimension_numbers<[1], [0], [0], [1], [0, 0, 1, 1], [], []>} : vector<32x256xbf16>, vector<256x256xbf16>, vector<32x256xf32> -> vector<32x256xf32>
    %c0_16 = arith.constant 0 : index
    %c0_17 = arith.constant 0 : index
    %20 = vector.load %arg8[%c0_16, %c0_17] : memref<1x256xf32, #tpu.memory_space<vmem>>, vector<1x256xf32>
    %21 = vector.broadcast %20 : vector<1x256xf32> to vector<32x256xf32>
    %22 = arith.addf %19, %21 : vector<32x256xf32>
    %cst_18 = arith.constant 0.000000e+00 : f32
    %23 = vector.broadcast %cst_18 : f32 to vector<32x256xf32>
    %24 = arith.maximumf %22, %23 : vector<32x256xf32>
    %25 = vector.shape_cast %24 : vector<32x256xf32> to vector<2x16x256xf32>
    %cst_19 = arith.constant dense<0.000000e+00> : vector<2x256xf32>
    %26 = vector.multi_reduction <add>, %25, %cst_19 [1] : vector<2x16x256xf32> to vector<2x256xf32>
    %27 = arith.truncf %26 : vector<2x256xf32> to vector<2x256xbf16>
    %c0_20 = arith.constant 0 : index
    %c0_21 = arith.constant 0 : index
    %28 = vector.load %arg9[%c0_20, %c0_21] : memref<256x256xbf16, #tpu.memory_space<vmem>>, vector<256x256xbf16>
    %cst_22 = arith.constant dense<0.000000e+00> : vector<2x256xf32>
    %29 = tpu.matmul %27, %28, %cst_22 {dimension_numbers = #tpu.dot_dimension_numbers<[1], [0], [0], [1], [0, 0, 1, 1], [], []>} : vector<2x256xbf16>, vector<256x256xbf16>, vector<2x256xf32> -> vector<2x256xf32>
    %c0_23 = arith.constant 0 : index
    %c0_24 = arith.constant 0 : index
    %30 = vector.load %arg10[%c0_23, %c0_24] : memref<1x256xf32, #tpu.memory_space<vmem>>, vector<1x256xf32>
    %cst_25 = arith.constant 1.600000e+01 : f32
    %31 = vector.broadcast %cst_25 : f32 to vector<1x256xf32>
    %32 = arith.mulf %31, %30 : vector<1x256xf32>
    %33 = vector.broadcast %32 : vector<1x256xf32> to vector<2x256xf32>
    %34 = arith.addf %29, %33 : vector<2x256xf32>
    %35 = arith.truncf %34 : vector<2x256xf32> to vector<2x256xbf16>
    %c0_26 = arith.constant 0 : index
    %c0_27 = arith.constant 0 : index
    %36 = vector.load %arg11[%c0_26, %c0_27] : memref<256x256xbf16, #tpu.memory_space<vmem>>, vector<256x256xbf16>
    %cst_28 = arith.constant dense<0.000000e+00> : vector<2x256xf32>
    %37 = tpu.matmul %35, %36, %cst_28 {dimension_numbers = #tpu.dot_dimension_numbers<[1], [0], [0], [1], [0, 0, 1, 1], [], []>} : vector<2x256xbf16>, vector<256x256xbf16>, vector<2x256xf32> -> vector<2x256xf32>
    %c0_29 = arith.constant 0 : index
    %c0_30 = arith.constant 0 : index
    %38 = vector.load %arg12[%c0_29, %c0_30] : memref<1x256xf32, #tpu.memory_space<vmem>>, vector<1x256xf32>
    %39 = vector.broadcast %38 : vector<1x256xf32> to vector<2x256xf32>
    %40 = arith.addf %37, %39 : vector<2x256xf32>
    %cst_31 = arith.constant 0.000000e+00 : f32
    %41 = vector.broadcast %cst_31 : f32 to vector<2x256xf32>
    %42 = arith.maximumf %40, %41 : vector<2x256xf32>
    %43 = arith.truncf %42 : vector<2x256xf32> to vector<2x256xbf16>
    %c0_32 = arith.constant 0 : index
    %c0_33 = arith.constant 0 : index
    %44 = vector.load %arg13[%c0_32, %c0_33] : memref<256x256xbf16, #tpu.memory_space<vmem>>, vector<256x256xbf16>
    %cst_34 = arith.constant dense<0.000000e+00> : vector<2x256xf32>
    %45 = tpu.matmul %43, %44, %cst_34 {dimension_numbers = #tpu.dot_dimension_numbers<[1], [0], [0], [1], [0, 0, 1, 1], [], []>} : vector<2x256xbf16>, vector<256x256xbf16>, vector<2x256xf32> -> vector<2x256xf32>
    %c0_35 = arith.constant 0 : index
    %c0_36 = arith.constant 0 : index
    %46 = vector.load %arg14[%c0_35, %c0_36] : memref<1x256xf32, #tpu.memory_space<vmem>>, vector<1x256xf32>
    %47 = vector.broadcast %46 : vector<1x256xf32> to vector<2x256xf32>
    %48 = arith.addf %45, %47 : vector<2x256xf32>
    %c0_37 = arith.constant 0 : index
    %c0_38 = arith.constant 0 : index
    %c0_39 = arith.constant 0 : index
    %49 = vector.load %arg2[%c0_37, %c0_38, %c0_39] : memref<1x2x256xbf16, #tpu.memory_space<vmem>>, vector<1x2x256xbf16>
    %50 = vector.shape_cast %49 : vector<1x2x256xbf16> to vector<2x256xbf16>
    %51 = arith.extf %50 : vector<2x256xbf16> to vector<2x256xf32>
    %52 = arith.mulf %48, %51 : vector<2x256xf32>
    %cst_40 = arith.constant 0.000000e+00 : f32
    %53 = vector.broadcast %cst_40 : f32 to vector<2x256xf32>
    %54 = arith.maximumf %52, %53 : vector<2x256xf32>
    %55 = arith.truncf %54 : vector<2x256xf32> to vector<2x256xbf16>
    %c0_41 = arith.constant 0 : index
    %c0_42 = arith.constant 0 : index
    %56 = vector.load %arg15[%c0_41, %c0_42] : memref<256x128xbf16, #tpu.memory_space<vmem>>, vector<256x128xbf16>
    %cst_43 = arith.constant dense<0.000000e+00> : vector<2x128xf32>
    %57 = tpu.matmul %55, %56, %cst_43 {dimension_numbers = #tpu.dot_dimension_numbers<[1], [0], [0], [1], [0, 0, 1, 1], [], []>} : vector<2x256xbf16>, vector<256x128xbf16>, vector<2x128xf32> -> vector<2x128xf32>
    %c0_44 = arith.constant 0 : index
    %c0_45 = arith.constant 0 : index
    %58 = vector.load %arg16[%c0_44, %c0_45] : memref<1x128xf32, #tpu.memory_space<vmem>>, vector<1x128xf32>
    %59 = vector.broadcast %58 : vector<1x128xf32> to vector<2x128xf32>
    %60 = arith.addf %57, %59 : vector<2x128xf32>
    %c0_46 = arith.constant 0 : index
    %c0_47 = arith.constant 0 : index
    %c0_48 = arith.constant 0 : index
    %61 = vector.load %arg17[%c0_46, %c0_47, %c0_48] : memref<1x2x128xf32, #tpu.memory_space<vmem>>, vector<1x2x128xf32>
    %62 = vector.shape_cast %61 : vector<1x2x128xf32> to vector<2x128xf32>
    %63 = vector.shape_cast %60 : vector<2x128xf32> to vector<1x2x128xf32>
    tpu.vector_store %arg17[%c0_46, %c0_47, %c0_48], %63 {strides = array<i32>} : memref<1x2x128xf32, #tpu.memory_space<vmem>>, vector<1x2x128xf32>,
    return
  }
  func.func @transform_0(%arg0: i32) -> (i32, i32, i32) {
    %c0_i32 = arith.constant 0 : i32
    %c0_i32_0 = arith.constant 0 : i32
    %c0_i32_1 = arith.constant 0 : i32
    return %arg0, %c0_i32, %c0_i32_0 : i32, i32, i32
  }
  func.func @transform_1(%arg0: i32) -> (i32, i32, i32) {
    %c0_i32 = arith.constant 0 : i32
    %c0_i32_0 = arith.constant 0 : i32
    %c0_i32_1 = arith.constant 0 : i32
    return %arg0, %c0_i32, %c0_i32_0 : i32, i32, i32
  }
  func.func @transform_2(%arg0: i32) -> (i32, i32) {
    %c0_i32 = arith.constant 0 : i32
    %c0_i32_0 = arith.constant 0 : i32
    %c0_i32_1 = arith.constant 0 : i32
    return %c0_i32, %c0_i32_0 : i32, i32
  }
  func.func @transform_3(%arg0: i32) -> (i32, i32) {
    %c0_i32 = arith.constant 0 : i32
    %c0_i32_0 = arith.constant 0 : i32
    %c0_i32_1 = arith.constant 0 : i32
    return %c0_i32, %c0_i32_0 : i32, i32
  }
  func.func @transform_4(%arg0: i32) -> (i32, i32) {
    %c0_i32 = arith.constant 0 : i32
    %c0_i32_0 = arith.constant 0 : i32
    %c0_i32_1 = arith.constant 0 : i32
    return %c0_i32, %c0_i32_0 : i32, i32
  }
  func.func @transform_5(%arg0: i32) -> (i32, i32) {
    %c0_i32 = arith.constant 0 : i32
    %c0_i32_0 = arith.constant 0 : i32
    %c0_i32_1 = arith.constant 0 : i32
    return %c0_i32, %c0_i32_0 : i32, i32
  }
  func.func @transform_6(%arg0: i32) -> (i32, i32) {
    %c0_i32 = arith.constant 0 : i32
    %c0_i32_0 = arith.constant 0 : i32
    %c0_i32_1 = arith.constant 0 : i32
    return %c0_i32, %c0_i32_0 : i32, i32
  }
  func.func @transform_7(%arg0: i32) -> (i32, i32) {
    %c0_i32 = arith.constant 0 : i32
    %c0_i32_0 = arith.constant 0 : i32
    %c0_i32_1 = arith.constant 0 : i32
    return %c0_i32, %c0_i32_0 : i32, i32
  }
  func.func @transform_8(%arg0: i32) -> (i32, i32) {
    %c0_i32 = arith.constant 0 : i32
    %c0_i32_0 = arith.constant 0 : i32
    %c0_i32_1 = arith.constant 0 : i32
    return %c0_i32, %c0_i32_0 : i32, i32
  }
  func.func @transform_9(%arg0: i32) -> (i32, i32) {
    %c0_i32 = arith.constant 0 : i32
    %c0_i32_0 = arith.constant 0 : i32
    %c0_i32_1 = arith.constant 0 : i32
    return %c0_i32, %c0_i32_0 : i32, i32
  }
  func.func @transform_10(%arg0: i32) -> (i32, i32) {
    %c0_i32 = arith.constant 0 : i32
    %c0_i32_0 = arith.constant 0 : i32
    %c0_i32_1 = arith.constant 0 : i32
    return %c0_i32, %c0_i32_0 : i32, i32
  }
  func.func @transform_11(%arg0: i32) -> (i32, i32) {
    %c0_i32 = arith.constant 0 : i32
    %c0_i32_0 = arith.constant 0 : i32
    %c0_i32_1 = arith.constant 0 : i32
    return %c0_i32, %c0_i32_0 : i32, i32
  }
  func.func @transform_12(%arg0: i32) -> (i32, i32) {
    %c0_i32 = arith.constant 0 : i32
    %c0_i32_0 = arith.constant 0 : i32
    %c0_i32_1 = arith.constant 0 : i32
    return %c0_i32, %c0_i32_0 : i32, i32
  }
  func.func @transform_13(%arg0: i32) -> (i32, i32) {
    %c0_i32 = arith.constant 0 : i32
    %c0_i32_0 = arith.constant 0 : i32
    %c0_i32_1 = arith.constant 0 : i32
    return %c0_i32, %c0_i32_0 : i32, i32
  }
  func.func @transform_14(%arg0: i32) -> (i32, i32) {
    %c0_i32 = arith.constant 0 : i32
    %c0_i32_0 = arith.constant 0 : i32
    %c0_i32_1 = arith.constant 0 : i32
    return %c0_i32, %c0_i32_0 : i32, i32
  }
  func.func @transform_15(%arg0: i32) -> (i32, i32) {
    %c0_i32 = arith.constant 0 : i32
    %c0_i32_0 = arith.constant 0 : i32
    %c0_i32_1 = arith.constant 0 : i32
    return %c0_i32, %c0_i32_0 : i32, i32
  }
  func.func @transform_16(%arg0: i32) -> (i32, i32, i32) {
    %c0_i32 = arith.constant 0 : i32
    %c0_i32_0 = arith.constant 0 : i32
    %c0_i32_1 = arith.constant 0 : i32
    return %arg0, %c0_i32, %c0_i32_0 : i32, i32, i32
  }
}

</mosaic_0001>

<llo_original>
// kernel: tpu_custom_call.1
$region0: #{tpu_custom_call.1}
  #allocation0 [shape = 'u32[]', space=smem, size = 0x4, offset = 0x4, fixed_abs, tag = 'smem constant byte address 0x4 - core index']
  #allocation1 [shape = 'u32[144,128]{1,0:T(1,128)}', space=vmem, size = 0x12000, scoped, tag = 'internal scratch']
  %s0 = inlined_call_operand.hbm [shape: bf16[1,32,128], index: 0, kind: input, shape index: {}]
  %s1 = inlined_call_operand.hbm [shape: bf16[1,2,256], index: 1, kind: input, shape index: {}]
  %s2 = inlined_call_operand.hbm [shape: bf16[128,256], index: 2, kind: input, shape index: {}]
  %s3 = inlined_call_operand.vmem [shape: f32[1,256], index: 3, kind: input, shape index: {}]
  %s4 = inlined_call_operand.hbm [shape: bf16[256,256], index: 4, kind: input, shape index: {}]
  %s5 = inlined_call_operand.vmem [shape: f32[1,256], index: 5, kind: input, shape index: {}]
  %s6 = inlined_call_operand.hbm [shape: bf16[256,256], index: 6, kind: input, shape index: {}]
  %s7 = inlined_call_operand.vmem [shape: f32[1,256], index: 7, kind: input, shape index: {}]
  %s8 = inlined_call_operand.hbm [shape: bf16[256,256], index: 8, kind: input, shape index: {}]
  %s9 = inlined_call_operand.vmem [shape: f32[1,256], index: 9, kind: input, shape index: {}]
  %s10 = inlined_call_operand.hbm [shape: bf16[256,256], index: 10, kind: input, shape index: {}]
  %s11 = inlined_call_operand.vmem [shape: f32[1,256], index: 11, kind: input, shape index: {}]
  %s12 = inlined_call_operand.hbm [shape: bf16[256,256], index: 12, kind: input, shape index: {}]
  %s13 = inlined_call_operand.vmem [shape: f32[1,256], index: 13, kind: input, shape index: {}]
  %s14 = inlined_call_operand.hbm [shape: bf16[256,128], index: 14, kind: input, shape index: {}]
  %s15 = inlined_call_operand.vmem [shape: f32[1,128], index: 15, kind: input, shape index: {}]
  %s16 = inlined_call_operand.hbm [shape: f32[1,2,128], index: 16, kind: output, shape index: {}]
  %s17 = sld [smem:[#allocation0]]
  $region110: #{tpu_custom_call.1} parent=0
    _
  %s19 = ssub.s32 1, %s17
  %s20 = scalar_select 0, %s19, %s17
  $region1: #{tpu_custom_call.1} parent=0
    #allocation2 [shape = 'u8[8192]{0}', space=vmem, size = 0x2000, scoped, tag = 'input window, operand 0, single buffered']
    #allocation3 [shape = 's32[1]{0}', space=sflag, size = 0x4, scoped, tag = 'scoped memory for tpu_custom_call.1']
    #allocation4 [shape = 's32[1]{0}', space=sflag, size = 0x4, scoped, tag = 'scoped memory for tpu_custom_call.1']
    #allocation5 [shape = 'u8[1024]{0}', space=vmem, size = 0x400, scoped, tag = 'input window, operand 1, single buffered']
    #allocation6 [shape = 's32[1]{0}', space=sflag, size = 0x4, scoped, tag = 'scoped memory for tpu_custom_call.1']
    #allocation7 [shape = 'u8[65536]{0}', space=vmem, size = 0x10000, scoped, tag = 'input window, operand 2, single buffered']
    #allocation8 [shape = 'u8[131072]{0}', space=vmem, size = 0x20000, scoped, tag = 'input window, operand 4, single buffered']
    #allocation9 [shape = 's32[1]{0}', space=sflag, size = 0x4, scoped, tag = 'scoped memory for tpu_custom_call.1']
    #allocation10 [shape = 'u8[131072]{0}', space=vmem, size = 0x20000, scoped, tag = 'input window, operand 6, single buffered']
    #allocation11 [shape = 'u8[131072]{0}', space=vmem, size = 0x20000, scoped, tag = 'input window, operand 8, single buffered']
    #allocation12 [shape = 's32[1]{0}', space=sflag, size = 0x4, scoped, tag = 'scoped memory for tpu_custom_call.1']
    #allocation13 [shape = 'u8[131072]{0}', space=vmem, size = 0x20000, scoped, tag = 'input window, operand 10, single buffered']
    #allocation14 [shape = 'u8[131072]{0}', space=vmem, size = 0x20000, scoped, tag = 'input window, operand 12, single buffered']
    #allocation15 [shape = 's32[1]{0}', space=sflag, size = 0x4, scoped, tag = 'scoped memory for tpu_custom_call.1']
    #allocation16 [shape = 'u8[65536]{0}', space=vmem, size = 0x10000, scoped, tag = 'input window, operand 14, single buffered']
    #allocation17 [shape = 'u8[1024]{0}', space=vmem, size = 0x400, scoped, tag = 'output window, operand 0, single buffered']
    %21 = vsyncpa [#allocation3], 0
    %22 = vsyncpa [#allocation6], 0
    %23 = vsyncpa [#allocation9], 0
    %24 = vsyncpa [#allocation12], 0
    %25 = vsyncpa [#allocation15], 0
    %26 = vsyncpa [#allocation4], 0
    // Predicated region
    $region2: #{tpu_custom_call.1} parent=1 // pred_check
      _
    $region3: #{tpu_custom_call.1} parent=1 // pred_check_branch
      %28 = sbr.rel (0) target = $region5
    $region4: #{tpu_custom_call.1} parent=1 // pred_region
      %s30 = ssub.s32 256, 256
      %31 = vsyncadd [#allocation3], %s30
      %s32 = sshll.u32 [#allocation2], 4
      %s33 = int_to_ptr.vmem [resolvable:$true] %s32
      %38 = dma.hbm_to_vmem [thread:$0]  %s0, 256, %s33, [#allocation3], 64, 64, 4
    $region5: #{tpu_custom_call.1} parent=1 // pred_fallthru
      _
    // Predicated region
    $region6: #{tpu_custom_call.1} parent=1 // pred_check
      _
    $region7: #{tpu_custom_call.1} parent=1 // pred_check_branch
      %40 = sbr.rel (0) target = $region9
    $region8: #{tpu_custom_call.1} parent=1 // pred_region
      %s42 = ssub.s32 32, 32
      %43 = vsyncadd [#allocation6], %s42
      %s45 = sshll.u32 [#allocation5], 4
      %s46 = int_to_ptr.vmem [resolvable:$true] %s45
      %48 = dma.hbm_to_vmem [thread:$0]  %s1, 32, %s46, [#allocation6]
    $region9: #{tpu_custom_call.1} parent=1 // pred_fallthru
      _
    // Predicated region
    $region10: #{tpu_custom_call.1} parent=1 // pred_check
      _
    $region11: #{tpu_custom_call.1} parent=1 // pred_check_branch
      %50 = sbr.rel (0) target = $region13
    $region12: #{tpu_custom_call.1} parent=1 // pred_region
      %s52 = ssub.s32 2048, 2048
      %53 = vsyncadd [#allocation6], %s52
      %s54 = sshll.u32 [#allocation7], 4
      %s55 = int_to_ptr.vmem [resolvable:$true] %s54
      %60 = dma.hbm_to_vmem [thread:$0]  %s2, 2048, %s55, [#allocation6], 128, 128, 8
    $region13: #{tpu_custom_call.1} parent=1 // pred_fallthru
      _
    // Predicated region
    $region14: #{tpu_custom_call.1} parent=1 // pred_check
      _
    $region15: #{tpu_custom_call.1} parent=1 // pred_check_branch
      %62 = sbr.rel (0) target = $region17
    $region16: #{tpu_custom_call.1} parent=1 // pred_region
      _
    $region17: #{tpu_custom_call.1} parent=1 // pred_fallthru
      _
    // Predicated region
    $region18: #{tpu_custom_call.1} parent=1 // pred_check
      _
    $region19: #{tpu_custom_call.1} parent=1 // pred_check_branch
      %64 = sbr.rel (0) target = $region21
    $region20: #{tpu_custom_call.1} parent=1 // pred_region
      %s66 = ssub.s32 4096, 4096
      %67 = vsyncadd [#allocation9], %s66
      %s68 = sshll.u32 [#allocation8], 4
      %s69 = int_to_ptr.vmem [resolvable:$true] %s68
      %74 = dma.hbm_to_vmem [thread:$0]  %s4, 4096, %s69, [#allocation9], 128, 128, 8
    $region21: #{tpu_custom_call.1} parent=1 // pred_fallthru
      _
    // Predicated region
    $region22: #{tpu_custom_call.1} parent=1 // pred_check
      _
    $region23: #{tpu_custom_call.1} parent=1 // pred_check_branch
      %76 = sbr.rel (0) target = $region25
    $region24: #{tpu_custom_call.1} parent=1 // pred_region
      _
    $region25: #{tpu_custom_call.1} parent=1 // pred_fallthru
      _
    // Predicated region
    $region26: #{tpu_custom_call.1} parent=1 // pred_check
      _
    $region27: #{tpu_custom_call.1} parent=1 // pred_check_branch
      %78 = sbr.rel (0) target = $region29
    $region28: #{tpu_custom_call.1} parent=1 // pred_region
      %s80 = ssub.s32 4096, 4096
      %81 = vsyncadd [#allocation9], %s80
      %s82 = sshll.u32 [#allocation10], 4
      %s83 = int_to_ptr.vmem [resolvable:$true] %s82
      %88 = dma.hbm_to_vmem [thread:$0]  %s6, 4096, %s83, [#allocation9], 128, 128, 8
    $region29: #{tpu_custom_call.1} parent=1 // pred_fallthru
      _
    // Predicated region
    $region30: #{tpu_custom_call.1} parent=1 // pred_check
      _
    $region31: #{tpu_custom_call.1} parent=1 // pred_check_branch
      %90 = sbr.rel (0) target = $region33
    $region32: #{tpu_custom_call.1} parent=1 // pred_region
      _
    $region33: #{tpu_custom_call.1} parent=1 // pred_fallthru
      _
    // Predicated region
    $region34: #{tpu_custom_call.1} parent=1 // pred_check
      _
    $region35: #{tpu_custom_call.1} parent=1 // pred_check_branch
      %92 = sbr.rel (0) target = $region37
    $region36: #{tpu_custom_call.1} parent=1 // pred_region
      %s94 = ssub.s32 4096, 4096
      %95 = vsyncadd [#allocation12], %s94
      %s96 = sshll.u32 [#allocation11], 4
      %s97 = int_to_ptr.vmem [resolvable:$true] %s96
      %102 = dma.hbm_to_vmem [thread:$0]  %s8, 4096, %s97, [#allocation12], 128, 128, 8
    $region37: #{tpu_custom_call.1} parent=1 // pred_fallthru
      _
    // Predicated region
    $region38: #{tpu_custom_call.1} parent=1 // pred_check
      _
    $region39: #{tpu_custom_call.1} parent=1 // pred_check_branch
      %104 = sbr.rel (0) target = $region41
    $region40: #{tpu_custom_call.1} parent=1 // pred_region
      _
    $region41: #{tpu_custom_call.1} parent=1 // pred_fallthru
      _
    // Predicated region
    $region42: #{tpu_custom_call.1} parent=1 // pred_check
      _
    $region43: #{tpu_custom_call.1} parent=1 // pred_check_branch
      %106 = sbr.rel (0) target = $region45
    $region44: #{tpu_custom_call.1} parent=1 // pred_region
      %s108 = ssub.s32 4096, 4096
      %109 = vsyncadd [#allocation12], %s108
      %s110 = sshll.u32 [#allocation13], 4
      %s111 = int_to_ptr.vmem [resolvable:$true] %s110
      %116 = dma.hbm_to_vmem [thread:$0]  %s10, 4096, %s111, [#allocation12], 128, 128, 8
    $region45: #{tpu_custom_call.1} parent=1 // pred_fallthru
      _
    // Predicated region
    $region46: #{tpu_custom_call.1} parent=1 // pred_check
      _
    $region47: #{tpu_custom_call.1} parent=1 // pred_check_branch
      %118 = sbr.rel (0) target = $region49
    $region48: #{tpu_custom_call.1} parent=1 // pred_region
      _
    $region49: #{tpu_custom_call.1} parent=1 // pred_fallthru
      _
    // Predicated region
    $region50: #{tpu_custom_call.1} parent=1 // pred_check
      _
    $region51: #{tpu_custom_call.1} parent=1 // pred_check_branch
      %120 = sbr.rel (0) target = $region53
    $region52: #{tpu_custom_call.1} parent=1 // pred_region
      %s122 = ssub.s32 4096, 4096
      %123 = vsyncadd [#allocation15], %s122
      %s124 = sshll.u32 [#allocation14], 4
      %s125 = int_to_ptr.vmem [resolvable:$true] %s124
      %130 = dma.hbm_to_vmem [thread:$0]  %s12, 4096, %s125, [#allocation15], 128, 128, 8
    $region53: #{tpu_custom_call.1} parent=1 // pred_fallthru
      _
    // Predicated region
    $region54: #{tpu_custom_call.1} parent=1 // pred_check
      _
    $region55: #{tpu_custom_call.1} parent=1 // pred_check_branch
      %132 = sbr.rel (0) target = $region57
    $region56: #{tpu_custom_call.1} parent=1 // pred_region
      _
    $region57: #{tpu_custom_call.1} parent=1 // pred_fallthru
      _
    // Predicated region
    $region58: #{tpu_custom_call.1} parent=1 // pred_check
      _
    $region59: #{tpu_custom_call.1} parent=1 // pred_check_branch
      %134 = sbr.rel (0) target = $region61
    $region60: #{tpu_custom_call.1} parent=1 // pred_region
      %s136 = ssub.s32 2048, 2048
      %137 = vsyncadd [#allocation15], %s136
      %s138 = sshll.u32 [#allocation16], 4
      %s139 = int_to_ptr.vmem [resolvable:$true] %s138
      %144 = dma.hbm_to_vmem [thread:$0]  %s14, 2048, %s139, [#allocation15], 64, 64, 4
    $region61: #{tpu_custom_call.1} parent=1 // pred_fallthru
      _
    // Predicated region
    $region62: #{tpu_custom_call.1} parent=1 // pred_check
      _
    $region63: #{tpu_custom_call.1} parent=1 // pred_check_branch
      %146 = sbr.rel (0) target = $region65
    $region64: #{tpu_custom_call.1} parent=1 // pred_region
      _
    $region65: #{tpu_custom_call.1} parent=1 // pred_fallthru
      _
    // Predicated region
    $region66: #{tpu_custom_call.1} parent=1 // pred_check
      _
    $region67: #{tpu_custom_call.1} parent=1 // pred_check_branch
      %148 = sbr.rel (0) target = $region69
    $region68: #{tpu_custom_call.1} parent=1 // pred_region
      %149 = dma.done [#allocation3], 256
    $region69: #{tpu_custom_call.1} parent=1 // pred_fallthru
      _
    // Predicated region
    $region70: #{tpu_custom_call.1} parent=1 // pred_check
      _
    $region71: #{tpu_custom_call.1} parent=1 // pred_check_branch
      %151 = sbr.rel (0) target = $region73
    $region72: #{tpu_custom_call.1} parent=1 // pred_region
      %152 = dma.done [#allocation6], 32
    $region73: #{tpu_custom_call.1} parent=1 // pred_fallthru
      _
    // Predicated region
    $region74: #{tpu_custom_call.1} parent=1 // pred_check
      _
    $region75: #{tpu_custom_call.1} parent=1 // pred_check_branch
      %154 = sbr.rel (0) target = $region77
    $region76: #{tpu_custom_call.1} parent=1 // pred_region
      %155 = dma.done [#allocation6], 2048
    $region77: #{tpu_custom_call.1} parent=1 // pred_fallthru
      _
    // Predicated region
    $region78: #{tpu_custom_call.1} parent=1 // pred_check
      _
    $region79: #{tpu_custom_call.1} parent=1 // pred_check_branch
      %157 = sbr.rel (0) target = $region81
    $region80: #{tpu_custom_call.1} parent=1 // pred_region
      %158 = dma.done [#allocation9], 4096
    $region81: #{tpu_custom_call.1} parent=1 // pred_fallthru
      _
    // Predicated region
    $region82: #{tpu_custom_call.1} parent=1 // pred_check
      _
    $region83: #{tpu_custom_call.1} parent=1 // pred_check_branch
      %160 = sbr.rel (0) target = $region85
    $region84: #{tpu_custom_call.1} parent=1 // pred_region
      %161 = dma.done [#allocation9], 4096
    $region85: #{tpu_custom_call.1} parent=1 // pred_fallthru
      _
    // Predicated region
    $region86: #{tpu_custom_call.1} parent=1 // pred_check
      _
    $region87: #{tpu_custom_call.1} parent=1 // pred_check_branch
      %163 = sbr.rel (0) target = $region89
    $region88: #{tpu_custom_call.1} parent=1 // pred_region
      %164 = dma.done [#allocation12], 4096
    $region89: #{tpu_custom_call.1} parent=1 // pred_fallthru
      _
    // Predicated region
    $region90: #{tpu_custom_call.1} parent=1 // pred_check
      _
    $region91: #{tpu_custom_call.1} parent=1 // pred_check_branch
      %166 = sbr.rel (0) target = $region93
    $region92: #{tpu_custom_call.1} parent=1 // pred_region
      %167 = dma.done [#allocation12], 4096
    $region93: #{tpu_custom_call.1} parent=1 // pred_fallthru
      _
    // Predicated region
    $region94: #{tpu_custom_call.1} parent=1 // pred_check
      _
    $region95: #{tpu_custom_call.1} parent=1 // pred_check_branch
      %169 = sbr.rel (0) target = $region97
    $region96: #{tpu_custom_call.1} parent=1 // pred_region
      %170 = dma.done [#allocation15], 4096
    $region97: #{tpu_custom_call.1} parent=1 // pred_fallthru
      _
    // Predicated region
    $region98: #{tpu_custom_call.1} parent=1 // pred_check
      _
    $region99: #{tpu_custom_call.1} parent=1 // pred_check_branch
      %172 = sbr.rel (0) target = $region101
    $region100: #{tpu_custom_call.1} parent=1 // pred_region
      %173 = dma.done [#allocation15], 2048
    $region101: #{tpu_custom_call.1} parent=1 // pred_fallthru
      _
    %v175 = vld [vmem:[#allocation2] sm:$0xf]
    %v176 = vld [vmem:[#allocation2 + $0x4] sm:$0xf]
    %v177 = vld [vmem:[#allocation2 + $0x8] sm:$0xf]
    %v178 = vld [vmem:[#allocation2 + $0xc] sm:$0xf]
    %v179 = vld [vmem:[#allocation7] sm:$0xff]
    %v180 = vld [vmem:[#allocation7 + $0x8] sm:$0xff]
    %v181 = vld [vmem:[#allocation7 + $0x10] sm:$0xff]
    %v182 = vld [vmem:[#allocation7 + $0x18] sm:$0xff]
    %v183 = vld [vmem:[#allocation7 + $0x20] sm:$0xff]
    %v184 = vld [vmem:[#allocation7 + $0x28] sm:$0xff]
    %v185 = vld [vmem:[#allocation7 + $0x30] sm:$0xff]
    %v186 = vld [vmem:[#allocation7 + $0x38] sm:$0xff]
    %v187 = vld [vmem:[#allocation7 + $0x40] sm:$0xff]
    %v188 = vld [vmem:[#allocation7 + $0x48] sm:$0xff]
    %v189 = vld [vmem:[#allocation7 + $0x50] sm:$0xff]
    %v190 = vld [vmem:[#allocation7 + $0x58] sm:$0xff]
    %v191 = vld [vmem:[#allocation7 + $0x60] sm:$0xff]
    %v192 = vld [vmem:[#allocation7 + $0x68] sm:$0xff]
    %v193 = vld [vmem:[#allocation7 + $0x70] sm:$0xff]
    %v194 = vld [vmem:[#allocation7 + $0x78] sm:$0xff]
    %v195 = vld [vmem:[%s3] sm:$0x3]
    %v197 = vlaneseq
    %v198 = vshrl.u32 %v197, 7
    %v199 = vsub.s32 0, %v198
    %v200 = vrot.slane %v195, %v199
    %v201 = vlaneseq
    %v202 = vshrl.u32 %v201, 7
    %v203 = vsub.s32 1, %v202
    %v204 = vrot.slane %v195, %v203
    %v211 = vunpack.c.l.b16 %v175
    %v212 = vunpack.c.l.b16 %v176
    %v213 = vunpack.c.l.b16 %v177
    %v214 = vunpack.c.l.b16 %v178
    %v215 = vpack.c.b16 %v212, %v211
    %v216 = vpack.c.b16 %v214, %v213
    %v235 = vunpack.c.l.b16 %v179
    %v236 = vunpack.c.h.b16 %v179
    %v237 = vunpack.c.l.b16 %v180
    %v238 = vunpack.c.h.b16 %v180
    %v239 = vunpack.c.l.b16 %v181
    %v240 = vunpack.c.h.b16 %v181
    %v241 = vunpack.c.l.b16 %v182
    %v242 = vunpack.c.h.b16 %v182
    %v243 = vunpack.c.l.b16 %v183
    %v244 = vunpack.c.h.b16 %v183
    %v245 = vunpack.c.l.b16 %v184
    %v246 = vunpack.c.h.b16 %v184
    %v247 = vunpack.c.l.b16 %v185
    %v248 = vunpack.c.h.b16 %v185
    %v249 = vunpack.c.l.b16 %v186
    %v250 = vunpack.c.h.b16 %v186
    %v251 = vunpack.c.l.b16 %v187
    %v252 = vunpack.c.h.b16 %v187
    %v253 = vunpack.c.l.b16 %v188
    %v254 = vunpack.c.h.b16 %v188
    %v255 = vunpack.c.l.b16 %v189
    %v256 = vunpack.c.h.b16 %v189
    %v257 = vunpack.c.l.b16 %v190
    %v258 = vunpack.c.h.b16 %v190
    %v259 = vunpack.c.l.b16 %v191
    %v260 = vunpack.c.h.b16 %v191
    %v261 = vunpack.c.l.b16 %v192
    %v262 = vunpack.c.h.b16 %v192
    %v263 = vunpack.c.l.b16 %v193
    %v264 = vunpack.c.h.b16 %v193
    %v265 = vunpack.c.l.b16 %v194
    %v266 = vunpack.c.h.b16 %v194
    %v267 = vpack.c.b16 %v237, %v235
    %v268 = vpack.c.b16 %v238, %v236
    %v269 = vpack.c.b16 %v241, %v239
    %v270 = vpack.c.b16 %v242, %v240
    %v271 = vpack.c.b16 %v245, %v243
    %v272 = vpack.c.b16 %v246, %v244
    %v273 = vpack.c.b16 %v249, %v247
    %v274 = vpack.c.b16 %v250, %v248
    %v275 = vpack.c.b16 %v253, %v251
    %v276 = vpack.c.b16 %v254, %v252
    %v277 = vpack.c.b16 %v257, %v255
    %v278 = vpack.c.b16 %v258, %v256
    %v279 = vpack.c.b16 %v261, %v259
    %v280 = vpack.c.b16 %v262, %v260
    %v281 = vpack.c.b16 %v265, %v263
    %v282 = vpack.c.b16 %v266, %v264
    %299 = vmatprep.subr.bf16.mxu0 %v282
    %300 = vmatpush1.bf16.msra.mxu0 %v281
    %301 = vmatprep.subr.bf16.mxu0 %v280
    %302 = vmatpush1.bf16.msra.mxu0 %v279
    %303 = vmatprep.subr.bf16.mxu0 %v278
    %304 = vmatpush1.bf16.msra.mxu0 %v277
    %305 = vmatprep.subr.bf16.mxu0 %v276
    %306 = vmatpush1.bf16.msra.mxu0 %v275
    %307 = vmatprep.subr.bf16.mxu0 %v274
    %308 = vmatpush1.bf16.msra.mxu0 %v273
    %309 = vmatprep.subr.bf16.mxu0 %v272
    %310 = vmatpush1.bf16.msra.mxu0 %v271
    %311 = vmatprep.subr.bf16.mxu0 %v270
    %312 = vmatpush1.bf16.msra.mxu0 %v269
    %313 = vmatprep.subr.bf16.mxu0 %v268
    %314 = vmatpush1.bf16.msra.mxu0 %v267
    %315 = vmatprep.subr.bf16.mxu0 0
    %316 = vmatpush2.bf16.msra.mxu0 0
    %317 = vmatprep.subr.bf16.mxu0 0
    %318 = vmatpush2.bf16.msra.mxu0 0
    %319 = vmatprep.subr.bf16.mxu0 0
    %320 = vmatpush2.bf16.msra.mxu0 0
    %321 = vmatprep.subr.bf16.mxu0 0
    %322 = vmatpush2.bf16.msra.mxu0 0
    %323 = vmatprep.subr.bf16.mxu0 0
    %324 = vmatpush2.bf16.msra.mxu0 0
    %325 = vmatprep.subr.bf16.mxu0 0
    %326 = vmatpush2.bf16.msra.mxu0 0
    %327 = vmatprep.subr.bf16.mxu0 0
    %328 = vmatpush2.bf16.msra.mxu0 0
    %329 = vmatprep.subr.bf16.mxu0 0
    %330 = vmatpush2.bf16.msra.mxu0 0
    %331 = vmatprep.mubr.bf16.mxu0 0
    %332 = vmatmul.mubr.bf16.gmra.mxu0 %v215
    %v333 = vpop.f32.mrf.mxu0
    %v334 = vadd.f32 %v200, %v333
    %v335 = vpop.f32.mrf.mxu0
    %v336 = vadd.f32 %v204, %v335
    %v337 = vpop.f32.mrf.mxu0
    %v338 = vadd.f32 %v200, %v337
    %v339 = vpop.f32.mrf.mxu0
    %v340 = vadd.f32 %v204, %v339
    %341 = vmatprep.mubr.bf16.mxu0 0
    %342 = vmatmul.mubr.bf16.gmra.mxu0 %v216
    %v343 = vpop.f32.mrf.mxu0
    %v344 = vadd.f32 %v200, %v343
    %v345 = vpop.f32.mrf.mxu0
    %v346 = vadd.f32 %v204, %v345
    %v347 = vpop.f32.mrf.mxu0
    %v348 = vadd.f32 %v200, %v347
    %v349 = vpop.f32.mrf.mxu0
    %v350 = vadd.f32 %v204, %v349
    %351 = vdwg.mxu0
    %v352 = vmax.f32 %v334, 0.0
    %v353 = vmax.f32 %v336, 0.0
    %v354 = vmax.f32 %v338, 0.0
    %v355 = vmax.f32 %v340, 0.0
    %v356 = vmax.f32 %v344, 0.0
    %v357 = vmax.f32 %v346, 0.0
    %v358 = vmax.f32 %v348, 0.0
    %v359 = vmax.f32 %v350, 0.0
    %v360 = vpack.c.bf16 %v354, %v352
    %v361 = vpack.c.bf16 %v355, %v353
    %v362 = vpack.c.bf16 %v358, %v356
    %v363 = vpack.c.bf16 %v359, %v357
    %v364 = vld [vmem:[#allocation8] sm:$0xff]
    %v365 = vld [vmem:[#allocation8 + $0x8] sm:$0xff]
    %v366 = vld [vmem:[#allocation8 + $0x10] sm:$0xff]
    %v367 = vld [vmem:[#allocation8 + $0x18] sm:$0xff]
    %v368 = vld [vmem:[#allocation8 + $0x20] sm:$0xff]
    %v369 = vld [vmem:[#allocation8 + $0x28] sm:$0xff]
    %v370 = vld [vmem:[#allocation8 + $0x30] sm:$0xff]
    %v371 = vld [vmem:[#allocation8 + $0x38] sm:$0xff]
    %v372 = vld [vmem:[#allocation8 + $0x40] sm:$0xff]
    %v373 = vld [vmem:[#allocation8 + $0x48] sm:$0xff]
    %v374 = vld [vmem:[#allocation8 + $0x50] sm:$0xff]
    %v375 = vld [vmem:[#allocation8 + $0x58] sm:$0xff]
    %v376 = vld [vmem:[#allocation8 + $0x60] sm:$0xff]
    %v377 = vld [vmem:[#allocation8 + $0x68] sm:$0xff]
    %v378 = vld [vmem:[#allocation8 + $0x70] sm:$0xff]
    %v379 = vld [vmem:[#allocation8 + $0x78] sm:$0xff]
    %v380 = vld [vmem:[#allocation8 + $0x80] sm:$0xff]
    %v381 = vld [vmem:[#allocation8 + $0x88] sm:$0xff]
    %v382 = vld [vmem:[#allocation8 + $0x90] sm:$0xff]
    %v383 = vld [vmem:[#allocation8 + $0x98] sm:$0xff]
    %v384 = vld [vmem:[#allocation8 + $0xa0] sm:$0xff]
    %v385 = vld [vmem:[#allocation8 + $0xa8] sm:$0xff]
    %v386 = vld [vmem:[#allocation8 + $0xb0] sm:$0xff]
    %v387 = vld [vmem:[#allocation8 + $0xb8] sm:$0xff]
    %v388 = vld [vmem:[#allocation8 + $0xc0] sm:$0xff]
    %v389 = vld [vmem:[#allocation8 + $0xc8] sm:$0xff]
    %v390 = vld [vmem:[#allocation8 + $0xd0] sm:$0xff]
    %v391 = vld [vmem:[#allocation8 + $0xd8] sm:$0xff]
    %v392 = vld [vmem:[#allocation8 + $0xe0] sm:$0xff]
    %v393 = vld [vmem:[#allocation8 + $0xe8] sm:$0xff]
    %v394 = vld [vmem:[#allocation8 + $0xf0] sm:$0xff]
    %v395 = vld [vmem:[#allocation8 + $0xf8] sm:$0xff]
    %v396 = vld [vmem:[%s5] sm:$0x3]
    %v398 = vlaneseq
    %v399 = vshrl.u32 %v398, 7
    %v400 = vsub.s32 0, %v399
    %v401 = vrot.slane %v396, %v400
    %v402 = vlaneseq
    %v403 = vshrl.u32 %v402, 7
    %v404 = vsub.s32 1, %v403
    %v405 = vrot.slane %v396, %v404
    %v440 = vunpack.c.l.b16 %v364
    %v441 = vunpack.c.h.b16 %v364
    %v442 = vunpack.c.l.b16 %v365
    %v443 = vunpack.c.h.b16 %v365
    %v444 = vunpack.c.l.b16 %v366
    %v445 = vunpack.c.h.b16 %v366
    %v446 = vunpack.c.l.b16 %v367
    %v447 = vunpack.c.h.b16 %v367
    %v448 = vunpack.c.l.b16 %v368
    %v449 = vunpack.c.h.b16 %v368
    %v450 = vunpack.c.l.b16 %v369
    %v451 = vunpack.c.h.b16 %v369
    %v452 = vunpack.c.l.b16 %v370
    %v453 = vunpack.c.h.b16 %v370
    %v454 = vunpack.c.l.b16 %v371
    %v455 = vunpack.c.h.b16 %v371
    %v456 = vunpack.c.l.b16 %v372
    %v457 = vunpack.c.h.b16 %v372
    %v458 = vunpack.c.l.b16 %v373
    %v459 = vunpack.c.h.b16 %v373
    %v460 = vunpack.c.l.b16 %v374
    %v461 = vunpack.c.h.b16 %v374
    %v462 = vunpack.c.l.b16 %v375
    %v463 = vunpack.c.h.b16 %v375
    %v464 = vunpack.c.l.b16 %v376
    %v465 = vunpack.c.h.b16 %v376
    %v466 = vunpack.c.l.b16 %v377
    %v467 = vunpack.c.h.b16 %v377
    %v468 = vunpack.c.l.b16 %v378
    %v469 = vunpack.c.h.b16 %v378
    %v470 = vunpack.c.l.b16 %v379
    %v471 = vunpack.c.h.b16 %v379
    %v472 = vunpack.c.l.b16 %v380
    %v473 = vunpack.c.h.b16 %v380
    %v474 = vunpack.c.l.b16 %v381
    %v475 = vunpack.c.h.b16 %v381
    %v476 = vunpack.c.l.b16 %v382
    %v477 = vunpack.c.h.b16 %v382
    %v478 = vunpack.c.l.b16 %v383
    %v479 = vunpack.c.h.b16 %v383
    %v480 = vunpack.c.l.b16 %v384
    %v481 = vunpack.c.h.b16 %v384
    %v482 = vunpack.c.l.b16 %v385
    %v483 = vunpack.c.h.b16 %v385
    %v484 = vunpack.c.l.b16 %v386
    %v485 = vunpack.c.h.b16 %v386
    %v486 = vunpack.c.l.b16 %v387
    %v487 = vunpack.c.h.b16 %v387
    %v488 = vunpack.c.l.b16 %v388
    %v489 = vunpack.c.h.b16 %v388
    %v490 = vunpack.c.l.b16 %v389
    %v491 = vunpack.c.h.b16 %v389
    %v492 = vunpack.c.l.b16 %v390
    %v493 = vunpack.c.h.b16 %v390
    %v494 = vunpack.c.l.b16 %v391
    %v495 = vunpack.c.h.b16 %v391
    %v496 = vunpack.c.l.b16 %v392
    %v497 = vunpack.c.h.b16 %v392
    %v498 = vunpack.c.l.b16 %v393
    %v499 = vunpack.c.h.b16 %v393
    %v500 = vunpack.c.l.b16 %v394
    %v501 = vunpack.c.h.b16 %v394
    %v502 = vunpack.c.l.b16 %v395
    %v503 = vunpack.c.h.b16 %v395
    %v504 = vpack.c.b16 %v442, %v440
    %v505 = vpack.c.b16 %v443, %v441
    %v506 = vpack.c.b16 %v446, %v444
    %v507 = vpack.c.b16 %v447, %v445
    %v508 = vpack.c.b16 %v450, %v448
    %v509 = vpack.c.b16 %v451, %v449
    %v510 = vpack.c.b16 %v454, %v452
    %v511 = vpack.c.b16 %v455, %v453
    %v512 = vpack.c.b16 %v458, %v456
    %v513 = vpack.c.b16 %v459, %v457
    %v514 = vpack.c.b16 %v462, %v460
    %v515 = vpack.c.b16 %v463, %v461
    %v516 = vpack.c.b16 %v466, %v464
    %v517 = vpack.c.b16 %v467, %v465
    %v518 = vpack.c.b16 %v470, %v468
    %v519 = vpack.c.b16 %v471, %v469
    %v520 = vpack.c.b16 %v474, %v472
    %v521 = vpack.c.b16 %v475, %v473
    %v522 = vpack.c.b16 %v478, %v476
    %v523 = vpack.c.b16 %v479, %v477
    %v524 = vpack.c.b16 %v482, %v480
    %v525 = vpack.c.b16 %v483, %v481
    %v526 = vpack.c.b16 %v486, %v484
    %v527 = vpack.c.b16 %v487, %v485
    %v528 = vpack.c.b16 %v490, %v488
    %v529 = vpack.c.b16 %v491, %v489
    %v530 = vpack.c.b16 %v494, %v492
    %v531 = vpack.c.b16 %v495, %v493
    %v532 = vpack.c.b16 %v498, %v496
    %v533 = vpack.c.b16 %v499, %v497
    %v534 = vpack.c.b16 %v502, %v500
    %v535 = vpack.c.b16 %v503, %v501
    %568 = vmatprep.subr.bf16.mxu0 %v519
    %569 = vmatpush1.bf16.msra.mxu0 %v518
    %570 = vmatprep.subr.bf16.mxu0 %v517
    %571 = vmatpush1.bf16.msra.mxu0 %v516
    %572 = vmatprep.subr.bf16.mxu0 %v515
    %573 = vmatpush1.bf16.msra.mxu0 %v514
    %574 = vmatprep.subr.bf16.mxu0 %v513
    %575 = vmatpush1.bf16.msra.mxu0 %v512
    %576 = vmatprep.subr.bf16.mxu0 %v511
    %577 = vmatpush1.bf16.msra.mxu0 %v510
    %578 = vmatprep.subr.bf16.mxu0 %v509
    %579 = vmatpush1.bf16.msra.mxu0 %v508
    %580 = vmatprep.subr.bf16.mxu0 %v507
    %581 = vmatpush1.bf16.msra.mxu0 %v506
    %582 = vmatprep.subr.bf16.mxu0 %v505
    %583 = vmatpush1.bf16.msra.mxu0 %v504
    %584 = vmatprep.subr.bf16.mxu0 %v535
    %585 = vmatpush2.bf16.msra.mxu0 %v534
    %586 = vmatprep.subr.bf16.mxu0 %v533
    %587 = vmatpush2.bf16.msra.mxu0 %v532
    %588 = vmatprep.subr.bf16.mxu0 %v531
    %589 = vmatpush2.bf16.msra.mxu0 %v530
    %590 = vmatprep.subr.bf16.mxu0 %v529
    %591 = vmatpush2.bf16.msra.mxu0 %v528
    %592 = vmatprep.subr.bf16.mxu0 %v527
    %593 = vmatpush2.bf16.msra.mxu0 %v526
    %594 = vmatprep.subr.bf16.mxu0 %v525
    %595 = vmatpush2.bf16.msra.mxu0 %v524
    %596 = vmatprep.subr.bf16.mxu0 %v523
    %597 = vmatpush2.bf16.msra.mxu0 %v522
    %598 = vmatprep.subr.bf16.mxu0 %v521
    %599 = vmatpush2.bf16.msra.mxu0 %v520
    %600 = vmatprep.mubr.bf16.mxu0 %v361
    %601 = vmatmul.mubr.bf16.gmra.mxu0 %v360
    %v602 = vpop.f32.mrf.mxu0
    %v603 = vadd.f32 %v401, %v602
    %v604 = vpop.f32.mrf.mxu0
    %v605 = vadd.f32 %v405, %v604
    %v606 = vpop.f32.mrf.mxu0
    %v607 = vadd.f32 %v401, %v606
    %v608 = vpop.f32.mrf.mxu0
    %v609 = vadd.f32 %v405, %v608
    %610 = vmatprep.mubr.bf16.mxu0 %v363
    %611 = vmatmul.mubr.bf16.gmra.mxu0 %v362
    %v612 = vpop.f32.mrf.mxu0
    %v613 = vadd.f32 %v401, %v612
    %v614 = vpop.f32.mrf.mxu0
    %v615 = vadd.f32 %v405, %v614
    %v616 = vpop.f32.mrf.mxu0
    %v617 = vadd.f32 %v401, %v616
    %v618 = vpop.f32.mrf.mxu0
    %v619 = vadd.f32 %v405, %v618
    %620 = vdwg.mxu0
    %v621 = vmax.f32 %v603, 0.0
    %v622 = vmax.f32 %v605, 0.0
    %v623 = vmax.f32 %v607, 0.0
    %v624 = vmax.f32 %v609, 0.0
    %v625 = vmax.f32 %v613, 0.0
    %v626 = vmax.f32 %v615, 0.0
    %v627 = vmax.f32 %v617, 0.0
    %v628 = vmax.f32 %v619, 0.0
    %v629 = vpack.c.bf16 %v623, %v621
    %v630 = vpack.c.bf16 %v624, %v622
    %v631 = vpack.c.bf16 %v627, %v625
    %v632 = vpack.c.bf16 %v628, %v626
    %v633 = vld [vmem:[#allocation10] sm:$0xff]
    %v634 = vld [vmem:[#allocation10 + $0x8] sm:$0xff]
    %v635 = vld [vmem:[#allocation10 + $0x10] sm:$0xff]
    %v636 = vld [vmem:[#allocation10 + $0x18] sm:$0xff]
    %v637 = vld [vmem:[#allocation10 + $0x20] sm:$0xff]
    %v638 = vld [vmem:[#allocation10 + $0x28] sm:$0xff]
    %v639 = vld [vmem:[#allocation10 + $0x30] sm:$0xff]
    %v640 = vld [vmem:[#allocation10 + $0x38] sm:$0xff]
    %v641 = vld [vmem:[#allocation10 + $0x40] sm:$0xff]
    %v642 = vld [vmem:[#allocation10 + $0x48] sm:$0xff]
    %v643 = vld [vmem:[#allocation10 + $0x50] sm:$0xff]
    %v644 = vld [vmem:[#allocation10 + $0x58] sm:$0xff]
    %v645 = vld [vmem:[#allocation10 + $0x60] sm:$0xff]
    %v646 = vld [vmem:[#allocation10 + $0x68] sm:$0xff]
    %v647 = vld [vmem:[#allocation10 + $0x70] sm:$0xff]
    %v648 = vld [vmem:[#allocation10 + $0x78] sm:$0xff]
    %v649 = vld [vmem:[#allocation10 + $0x80] sm:$0xff]
    %v650 = vld [vmem:[#allocation10 + $0x88] sm:$0xff]
    %v651 = vld [vmem:[#allocation10 + $0x90] sm:$0xff]
    %v652 = vld [vmem:[#allocation10 + $0x98] sm:$0xff]
    %v653 = vld [vmem:[#allocation10 + $0xa0] sm:$0xff]
    %v654 = vld [vmem:[#allocation10 + $0xa8] sm:$0xff]
    %v655 = vld [vmem:[#allocation10 + $0xb0] sm:$0xff]
    %v656 = vld [vmem:[#allocation10 + $0xb8] sm:$0xff]
    %v657 = vld [vmem:[#allocation10 + $0xc0] sm:$0xff]
    %v658 = vld [vmem:[#allocation10 + $0xc8] sm:$0xff]
    %v659 = vld [vmem:[#allocation10 + $0xd0] sm:$0xff]
    %v660 = vld [vmem:[#allocation10 + $0xd8] sm:$0xff]
    %v661 = vld [vmem:[#allocation10 + $0xe0] sm:$0xff]
    %v662 = vld [vmem:[#allocation10 + $0xe8] sm:$0xff]
    %v663 = vld [vmem:[#allocation10 + $0xf0] sm:$0xff]
    %v664 = vld [vmem:[#allocation10 + $0xf8] sm:$0xff]
    %v665 = vld [vmem:[%s7] sm:$0x3]
    %v667 = vlaneseq
    %v668 = vshrl.u32 %v667, 7
    %v669 = vsub.s32 0, %v668
    %v670 = vrot.slane %v665, %v669
    %v671 = vlaneseq
    %v672 = vshrl.u32 %v671, 7
    %v673 = vsub.s32 1, %v672
    %v674 = vrot.slane %v665, %v673
    %v709 = vunpack.c.l.b16 %v633
    %v710 = vunpack.c.h.b16 %v633
    %v711 = vunpack.c.l.b16 %v634
    %v712 = vunpack.c.h.b16 %v634
    %v713 = vunpack.c.l.b16 %v635
    %v714 = vunpack.c.h.b16 %v635
    %v715 = vunpack.c.l.b16 %v636
    %v716 = vunpack.c.h.b16 %v636
    %v717 = vunpack.c.l.b16 %v637
    %v718 = vunpack.c.h.b16 %v637
    %v719 = vunpack.c.l.b16 %v638
    %v720 = vunpack.c.h.b16 %v638
    %v721 = vunpack.c.l.b16 %v639
    %v722 = vunpack.c.h.b16 %v639
    %v723 = vunpack.c.l.b16 %v640
    %v724 = vunpack.c.h.b16 %v640
    %v725 = vunpack.c.l.b16 %v641
    %v726 = vunpack.c.h.b16 %v641
    %v727 = vunpack.c.l.b16 %v642
    %v728 = vunpack.c.h.b16 %v642
    %v729 = vunpack.c.l.b16 %v643
    %v730 = vunpack.c.h.b16 %v643
    %v731 = vunpack.c.l.b16 %v644
    %v732 = vunpack.c.h.b16 %v644
    %v733 = vunpack.c.l.b16 %v645
    %v734 = vunpack.c.h.b16 %v645
    %v735 = vunpack.c.l.b16 %v646
    %v736 = vunpack.c.h.b16 %v646
    %v737 = vunpack.c.l.b16 %v647
    %v738 = vunpack.c.h.b16 %v647
    %v739 = vunpack.c.l.b16 %v648
    %v740 = vunpack.c.h.b16 %v648
    %v741 = vunpack.c.l.b16 %v649
    %v742 = vunpack.c.h.b16 %v649
    %v743 = vunpack.c.l.b16 %v650
    %v744 = vunpack.c.h.b16 %v650
    %v745 = vunpack.c.l.b16 %v651
    %v746 = vunpack.c.h.b16 %v651
    %v747 = vunpack.c.l.b16 %v652
    %v748 = vunpack.c.h.b16 %v652
    %v749 = vunpack.c.l.b16 %v653
    %v750 = vunpack.c.h.b16 %v653
    %v751 = vunpack.c.l.b16 %v654
    %v752 = vunpack.c.h.b16 %v654
    %v753 = vunpack.c.l.b16 %v655
    %v754 = vunpack.c.h.b16 %v655
    %v755 = vunpack.c.l.b16 %v656
    %v756 = vunpack.c.h.b16 %v656
    %v757 = vunpack.c.l.b16 %v657
    %v758 = vunpack.c.h.b16 %v657
    %v759 = vunpack.c.l.b16 %v658
    %v760 = vunpack.c.h.b16 %v658
    %v761 = vunpack.c.l.b16 %v659
    %v762 = vunpack.c.h.b16 %v659
    %v763 = vunpack.c.l.b16 %v660
    %v764 = vunpack.c.h.b16 %v660
    %v765 = vunpack.c.l.b16 %v661
    %v766 = vunpack.c.h.b16 %v661
    %v767 = vunpack.c.l.b16 %v662
    %v768 = vunpack.c.h.b16 %v662
    %v769 = vunpack.c.l.b16 %v663
    %v770 = vunpack.c.h.b16 %v663
    %v771 = vunpack.c.l.b16 %v664
    %v772 = vunpack.c.h.b16 %v664
    %v773 = vpack.c.b16 %v711, %v709
    %v774 = vpack.c.b16 %v712, %v710
    %v775 = vpack.c.b16 %v715, %v713
    %v776 = vpack.c.b16 %v716, %v714
    %v777 = vpack.c.b16 %v719, %v717
    %v778 = vpack.c.b16 %v720, %v718
    %v779 = vpack.c.b16 %v723, %v721
    %v780 = vpack.c.b16 %v724, %v722
    %v781 = vpack.c.b16 %v727, %v725
    %v782 = vpack.c.b16 %v728, %v726
    %v783 = vpack.c.b16 %v731, %v729
    %v784 = vpack.c.b16 %v732, %v730
    %v785 = vpack.c.b16 %v735, %v733
    %v786 = vpack.c.b16 %v736, %v734
    %v787 = vpack.c.b16 %v739, %v737
    %v788 = vpack.c.b16 %v740, %v738
    %v789 = vpack.c.b16 %v743, %v741
    %v790 = vpack.c.b16 %v744, %v742
    %v791 = vpack.c.b16 %v747, %v745
    %v792 = vpack.c.b16 %v748, %v746
    %v793 = vpack.c.b16 %v751, %v749
    %v794 = vpack.c.b16 %v752, %v750
    %v795 = vpack.c.b16 %v755, %v753
    %v796 = vpack.c.b16 %v756, %v754
    %v797 = vpack.c.b16 %v759, %v757
    %v798 = vpack.c.b16 %v760, %v758
    %v799 = vpack.c.b16 %v763, %v761
    %v800 = vpack.c.b16 %v764, %v762
    %v801 = vpack.c.b16 %v767, %v765
    %v802 = vpack.c.b16 %v768, %v766
    %v803 = vpack.c.b16 %v771, %v769
    %v804 = vpack.c.b16 %v772, %v770
    %837 = vmatprep.subr.bf16.mxu0 %v788
    %838 = vmatpush1.bf16.msra.mxu0 %v787
    %839 = vmatprep.subr.bf16.mxu0 %v786
    %840 = vmatpush1.bf16.msra.mxu0 %v785
    %841 = vmatprep.subr.bf16.mxu0 %v784
    %842 = vmatpush1.bf16.msra.mxu0 %v783
    %843 = vmatprep.subr.bf16.mxu0 %v782
    %844 = vmatpush1.bf16.msra.mxu0 %v781
    %845 = vmatprep.subr.bf16.mxu0 %v780
    %846 = vmatpush1.bf16.msra.mxu0 %v779
    %847 = vmatprep.subr.bf16.mxu0 %v778
    %848 = vmatpush1.bf16.msra.mxu0 %v777
    %849 = vmatprep.subr.bf16.mxu0 %v776
    %850 = vmatpush1.bf16.msra.mxu0 %v775
    %851 = vmatprep.subr.bf16.mxu0 %v774
    %852 = vmatpush1.bf16.msra.mxu0 %v773
    %853 = vmatprep.subr.bf16.mxu0 %v804
    %854 = vmatpush2.bf16.msra.mxu0 %v803
    %855 = vmatprep.subr.bf16.mxu0 %v802
    %856 = vmatpush2.bf16.msra.mxu0 %v801
    %857 = vmatprep.subr.bf16.mxu0 %v800
    %858 = vmatpush2.bf16.msra.mxu0 %v799
    %859 = vmatprep.subr.bf16.mxu0 %v798
    %860 = vmatpush2.bf16.msra.mxu0 %v797
    %861 = vmatprep.subr.bf16.mxu0 %v796
    %862 = vmatpush2.bf16.msra.mxu0 %v795
    %863 = vmatprep.subr.bf16.mxu0 %v794
    %864 = vmatpush2.bf16.msra.mxu0 %v793
    %865 = vmatprep.subr.bf16.mxu0 %v792
    %866 = vmatpush2.bf16.msra.mxu0 %v791
    %867 = vmatprep.subr.bf16.mxu0 %v790
    %868 = vmatpush2.bf16.msra.mxu0 %v789
    %869 = vmatprep.mubr.bf16.mxu0 %v630
    %870 = vmatmul.mubr.bf16.gmra.mxu0 %v629
    %v871 = vpop.f32.mrf.mxu0
    %v872 = vadd.f32 %v670, %v871
    %v873 = vpop.f32.mrf.mxu0
    %v874 = vadd.f32 %v674, %v873
    %v875 = vpop.f32.mrf.mxu0
    %v876 = vadd.f32 %v670, %v875
    %v877 = vpop.f32.mrf.mxu0
    %v878 = vadd.f32 %v674, %v877
    %879 = vmatprep.mubr.bf16.mxu0 %v632
    %880 = vmatmul.mubr.bf16.gmra.mxu0 %v631
    %v881 = vpop.f32.mrf.mxu0
    %v882 = vadd.f32 %v670, %v881
    %v883 = vpop.f32.mrf.mxu0
    %v884 = vadd.f32 %v674, %v883
    %v885 = vpop.f32.mrf.mxu0
    %v886 = vadd.f32 %v670, %v885
    %v887 = vpop.f32.mrf.mxu0
    %v888 = vadd.f32 %v674, %v887
    %889 = vdwg.mxu0
    %v890 = vmax.f32 %v872, 0.0
    %v891 = vmax.f32 %v874, 0.0
    %v892 = vmax.f32 %v876, 0.0
    %v893 = vmax.f32 %v878, 0.0
    %v894 = vmax.f32 %v882, 0.0
    %v895 = vmax.f32 %v884, 0.0
    %v896 = vmax.f32 %v886, 0.0
    %v897 = vmax.f32 %v888, 0.0
    %v898 = vadd.f32 %v890, %v892
    %v899 = vrot.slane %v898, 4
    %v900 = vadd.f32 %v898, %v899
    %v901 = vrot.slane %v900, 2
    %v902 = vadd.f32 %v900, %v901
    %v903 = vrot.slane %v902, 1
    %v904 = vadd.f32 %v902, %v903
    %v905 = vadd.f32 %v891, %v893
    %v906 = vrot.slane %v905, 4
    %v907 = vadd.f32 %v905, %v906
    %v908 = vrot.slane %v907, 2
    %v909 = vadd.f32 %v907, %v908
    %v910 = vrot.slane %v909, 1
    %v911 = vadd.f32 %v909, %v910
    %v912 = vadd.f32 %v894, %v896
    %v913 = vrot.slane %v912, 4
    %v914 = vadd.f32 %v912, %v913
    %v915 = vrot.slane %v914, 2
    %v916 = vadd.f32 %v914, %v915
    %v917 = vrot.slane %v916, 1
    %v918 = vadd.f32 %v916, %v917
    %v919 = vadd.f32 %v895, %v897
    %v920 = vrot.slane %v919, 4
    %v921 = vadd.f32 %v919, %v920
    %v922 = vrot.slane %v921, 2
    %v923 = vadd.f32 %v921, %v922
    %v924 = vrot.slane %v923, 1
    %v925 = vadd.f32 %v923, %v924
    %v926 = vpack.c.bf16 %v904, %v904
    %v927 = vpack.c.bf16 %v911, %v911
    %v928 = vpack.c.bf16 %v918, %v918
    %v929 = vpack.c.bf16 %v925, %v925
    %v930 = vld [vmem:[#allocation11] sm:$0xff]
    %v931 = vld [vmem:[#allocation11 + $0x8] sm:$0xff]
    %v932 = vld [vmem:[#allocation11 + $0x10] sm:$0xff]
    %v933 = vld [vmem:[#allocation11 + $0x18] sm:$0xff]
    %v934 = vld [vmem:[#allocation11 + $0x20] sm:$0xff]
    %v935 = vld [vmem:[#allocation11 + $0x28] sm:$0xff]
    %v936 = vld [vmem:[#allocation11 + $0x30] sm:$0xff]
    %v937 = vld [vmem:[#allocation11 + $0x38] sm:$0xff]
    %v938 = vld [vmem:[#allocation11 + $0x40] sm:$0xff]
    %v939 = vld [vmem:[#allocation11 + $0x48] sm:$0xff]
    %v940 = vld [vmem:[#allocation11 + $0x50] sm:$0xff]
    %v941 = vld [vmem:[#allocation11 + $0x58] sm:$0xff]
    %v942 = vld [vmem:[#allocation11 + $0x60] sm:$0xff]
    %v943 = vld [vmem:[#allocation11 + $0x68] sm:$0xff]
    %v944 = vld [vmem:[#allocation11 + $0x70] sm:$0xff]
    %v945 = vld [vmem:[#allocation11 + $0x78] sm:$0xff]
    %v946 = vld [vmem:[#allocation11 + $0x80] sm:$0xff]
    %v947 = vld [vmem:[#allocation11 + $0x88] sm:$0xff]
    %v948 = vld [vmem:[#allocation11 + $0x90] sm:$0xff]
    %v949 = vld [vmem:[#allocation11 + $0x98] sm:$0xff]
    %v950 = vld [vmem:[#allocation11 + $0xa0] sm:$0xff]
    %v951 = vld [vmem:[#allocation11 + $0xa8] sm:$0xff]
    %v952 = vld [vmem:[#allocation11 + $0xb0] sm:$0xff]
    %v953 = vld [vmem:[#allocation11 + $0xb8] sm:$0xff]
    %v954 = vld [vmem:[#allocation11 + $0xc0] sm:$0xff]
    %v955 = vld [vmem:[#allocation11 + $0xc8] sm:$0xff]
    %v956 = vld [vmem:[#allocation11 + $0xd0] sm:$0xff]
    %v957 = vld [vmem:[#allocation11 + $0xd8] sm:$0xff]
    %v958 = vld [vmem:[#allocation11 + $0xe0] sm:$0xff]
    %v959 = vld [vmem:[#allocation11 + $0xe8] sm:$0xff]
    %v960 = vld [vmem:[#allocation11 + $0xf0] sm:$0xff]
    %v961 = vld [vmem:[#allocation11 + $0xf8] sm:$0xff]
    %v962 = vld [vmem:[%s9] sm:$0x3]
    %v963 = vmul.f32 %v962, 16.0
    %v965 = vlaneseq
    %v966 = vshrl.u32 %v965, 7
    %v967 = vsub.s32 0, %v966
    %v968 = vrot.slane %v963, %v967
    %v969 = vlaneseq
    %v970 = vshrl.u32 %v969, 7
    %v971 = vsub.s32 1, %v970
    %v972 = vrot.slane %v963, %v971
    %v979 = vunpack.c.l.b16 %v926
    %v980 = vunpack.c.l.b16 %v927
    %v981 = vunpack.c.l.b16 %v928
    %v982 = vunpack.c.l.b16 %v929
    %vm983 = vcmask 1041409
    %v984 = vsel %vm983, %v981, %v979
    %v985 = vsel %vm983, %v982, %v980
    %v986 = vpack.c.b16 %v984, %v984
    %v987 = vpack.c.b16 %v985, %v985
    %v1022 = vunpack.c.l.b16 %v930
    %v1023 = vunpack.c.h.b16 %v930
    %v1024 = vunpack.c.l.b16 %v931
    %v1025 = vunpack.c.h.b16 %v931
    %v1026 = vunpack.c.l.b16 %v932
    %v1027 = vunpack.c.h.b16 %v932
    %v1028 = vunpack.c.l.b16 %v933
    %v1029 = vunpack.c.h.b16 %v933
    %v1030 = vunpack.c.l.b16 %v934
    %v1031 = vunpack.c.h.b16 %v934
    %v1032 = vunpack.c.l.b16 %v935
    %v1033 = vunpack.c.h.b16 %v935
    %v1034 = vunpack.c.l.b16 %v936
    %v1035 = vunpack.c.h.b16 %v936
    %v1036 = vunpack.c.l.b16 %v937
    %v1037 = vunpack.c.h.b16 %v937
    %v1038 = vunpack.c.l.b16 %v938
    %v1039 = vunpack.c.h.b16 %v938
    %v1040 = vunpack.c.l.b16 %v939
    %v1041 = vunpack.c.h.b16 %v939
    %v1042 = vunpack.c.l.b16 %v940
    %v1043 = vunpack.c.h.b16 %v940
    %v1044 = vunpack.c.l.b16 %v941
    %v1045 = vunpack.c.h.b16 %v941
    %v1046 = vunpack.c.l.b16 %v942
    %v1047 = vunpack.c.h.b16 %v942
    %v1048 = vunpack.c.l.b16 %v943
    %v1049 = vunpack.c.h.b16 %v943
    %v1050 = vunpack.c.l.b16 %v944
    %v1051 = vunpack.c.h.b16 %v944
    %v1052 = vunpack.c.l.b16 %v945
    %v1053 = vunpack.c.h.b16 %v945
    %v1054 = vunpack.c.l.b16 %v946
    %v1055 = vunpack.c.h.b16 %v946
    %v1056 = vunpack.c.l.b16 %v947
    %v1057 = vunpack.c.h.b16 %v947
    %v1058 = vunpack.c.l.b16 %v948
    %v1059 = vunpack.c.h.b16 %v948
    %v1060 = vunpack.c.l.b16 %v949
    %v1061 = vunpack.c.h.b16 %v949
    %v1062 = vunpack.c.l.b16 %v950
    %v1063 = vunpack.c.h.b16 %v950
    %v1064 = vunpack.c.l.b16 %v951
    %v1065 = vunpack.c.h.b16 %v951
    %v1066 = vunpack.c.l.b16 %v952
    %v1067 = vunpack.c.h.b16 %v952
    %v1068 = vunpack.c.l.b16 %v953
    %v1069 = vunpack.c.h.b16 %v953
    %v1070 = vunpack.c.l.b16 %v954
    %v1071 = vunpack.c.h.b16 %v954
    %v1072 = vunpack.c.l.b16 %v955
    %v1073 = vunpack.c.h.b16 %v955
    %v1074 = vunpack.c.l.b16 %v956
    %v1075 = vunpack.c.h.b16 %v956
    %v1076 = vunpack.c.l.b16 %v957
    %v1077 = vunpack.c.h.b16 %v957
    %v1078 = vunpack.c.l.b16 %v958
    %v1079 = vunpack.c.h.b16 %v958
    %v1080 = vunpack.c.l.b16 %v959
    %v1081 = vunpack.c.h.b16 %v959
    %v1082 = vunpack.c.l.b16 %v960
    %v1083 = vunpack.c.h.b16 %v960
    %v1084 = vunpack.c.l.b16 %v961
    %v1085 = vunpack.c.h.b16 %v961
    %v1086 = vpack.c.b16 %v1024, %v1022
    %v1087 = vpack.c.b16 %v1025, %v1023
    %v1088 = vpack.c.b16 %v1028, %v1026
    %v1089 = vpack.c.b16 %v1029, %v1027
    %v1090 = vpack.c.b16 %v1032, %v1030
    %v1091 = vpack.c.b16 %v1033, %v1031
    %v1092 = vpack.c.b16 %v1036, %v1034
    %v1093 = vpack.c.b16 %v1037, %v1035
    %v1094 = vpack.c.b16 %v1040, %v1038
    %v1095 = vpack.c.b16 %v1041, %v1039
    %v1096 = vpack.c.b16 %v1044, %v1042
    %v1097 = vpack.c.b16 %v1045, %v1043
    %v1098 = vpack.c.b16 %v1048, %v1046
    %v1099 = vpack.c.b16 %v1049, %v1047
    %v1100 = vpack.c.b16 %v1052, %v1050
    %v1101 = vpack.c.b16 %v1053, %v1051
    %v1102 = vpack.c.b16 %v1056, %v1054
    %v1103 = vpack.c.b16 %v1057, %v1055
    %v1104 = vpack.c.b16 %v1060, %v1058
    %v1105 = vpack.c.b16 %v1061, %v1059
    %v1106 = vpack.c.b16 %v1064, %v1062
    %v1107 = vpack.c.b16 %v1065, %v1063
    %v1108 = vpack.c.b16 %v1068, %v1066
    %v1109 = vpack.c.b16 %v1069, %v1067
    %v1110 = vpack.c.b16 %v1072, %v1070
    %v1111 = vpack.c.b16 %v1073, %v1071
    %v1112 = vpack.c.b16 %v1076, %v1074
    %v1113 = vpack.c.b16 %v1077, %v1075
    %v1114 = vpack.c.b16 %v1080, %v1078
    %v1115 = vpack.c.b16 %v1081, %v1079
    %v1116 = vpack.c.b16 %v1084, %v1082
    %v1117 = vpack.c.b16 %v1085, %v1083
    %1150 = vmatprep.subr.bf16.mxu0 %v1101
    %1151 = vmatpush1.bf16.msra.mxu0 %v1100
    %1152 = vmatprep.subr.bf16.mxu0 %v1099
    %1153 = vmatpush1.bf16.msra.mxu0 %v1098
    %1154 = vmatprep.subr.bf16.mxu0 %v1097
    %1155 = vmatpush1.bf16.msra.mxu0 %v1096
    %1156 = vmatprep.subr.bf16.mxu0 %v1095
    %1157 = vmatpush1.bf16.msra.mxu0 %v1094
    %1158 = vmatprep.subr.bf16.mxu0 %v1093
    %1159 = vmatpush1.bf16.msra.mxu0 %v1092
    %1160 = vmatprep.subr.bf16.mxu0 %v1091
    %1161 = vmatpush1.bf16.msra.mxu0 %v1090
    %1162 = vmatprep.subr.bf16.mxu0 %v1089
    %1163 = vmatpush1.bf16.msra.mxu0 %v1088
    %1164 = vmatprep.subr.bf16.mxu0 %v1087
    %1165 = vmatpush1.bf16.msra.mxu0 %v1086
    %1166 = vmatprep.subr.bf16.mxu0 %v1117
    %1167 = vmatpush2.bf16.msra.mxu0 %v1116
    %1168 = vmatprep.subr.bf16.mxu0 %v1115
    %1169 = vmatpush2.bf16.msra.mxu0 %v1114
    %1170 = vmatprep.subr.bf16.mxu0 %v1113
    %1171 = vmatpush2.bf16.msra.mxu0 %v1112
    %1172 = vmatprep.subr.bf16.mxu0 %v1111
    %1173 = vmatpush2.bf16.msra.mxu0 %v1110
    %1174 = vmatprep.subr.bf16.mxu0 %v1109
    %1175 = vmatpush2.bf16.msra.mxu0 %v1108
    %1176 = vmatprep.subr.bf16.mxu0 %v1107
    %1177 = vmatpush2.bf16.msra.mxu0 %v1106
    %1178 = vmatprep.subr.bf16.mxu0 %v1105
    %1179 = vmatpush2.bf16.msra.mxu0 %v1104
    %1180 = vmatprep.subr.bf16.mxu0 %v1103
    %1181 = vmatpush2.bf16.msra.mxu0 %v1102
    %1182 = vmatprep.mubr.bf16.mxu0 %v987
    %1183 = vmatmul.mubr.bf16.gmra.mxu0 %v986
    %v1184 = vpop.f32.mrf.mxu0
    %v1185 = vadd.f32 %v968, %v1184
    %v1186 = vpop.f32.mrf.mxu0
    %v1187 = vadd.f32 %v972, %v1186
    %v1188 = vpop.f32.mrf.mxu0
    %v1189 = vpop.f32.mrf.mxu0
    %1190 = vdwg.mxu0
    %v1191 = vpack.c.bf16 %v1185, %v1185
    %v1192 = vpack.c.bf16 %v1187, %v1187
    %v1193 = vld [vmem:[#allocation13] sm:$0xff]
    %v1194 = vld [vmem:[#allocation13 + $0x8] sm:$0xff]
    %v1195 = vld [vmem:[#allocation13 + $0x10] sm:$0xff]
    %v1196 = vld [vmem:[#allocation13 + $0x18] sm:$0xff]
    %v1197 = vld [vmem:[#allocation13 + $0x20] sm:$0xff]
    %v1198 = vld [vmem:[#allocation13 + $0x28] sm:$0xff]
    %v1199 = vld [vmem:[#allocation13 + $0x30] sm:$0xff]
    %v1200 = vld [vmem:[#allocation13 + $0x38] sm:$0xff]
    %v1201 = vld [vmem:[#allocation13 + $0x40] sm:$0xff]
    %v1202 = vld [vmem:[#allocation13 + $0x48] sm:$0xff]
    %v1203 = vld [vmem:[#allocation13 + $0x50] sm:$0xff]
    %v1204 = vld [vmem:[#allocation13 + $0x58] sm:$0xff]
    %v1205 = vld [vmem:[#allocation13 + $0x60] sm:$0xff]
    %v1206 = vld [vmem:[#allocation13 + $0x68] sm:$0xff]
    %v1207 = vld [vmem:[#allocation13 + $0x70] sm:$0xff]
    %v1208 = vld [vmem:[#allocation13 + $0x78] sm:$0xff]
    %v1209 = vld [vmem:[#allocation13 + $0x80] sm:$0xff]
    %v1210 = vld [vmem:[#allocation13 + $0x88] sm:$0xff]
    %v1211 = vld [vmem:[#allocation13 + $0x90] sm:$0xff]
    %v1212 = vld [vmem:[#allocation13 + $0x98] sm:$0xff]
    %v1213 = vld [vmem:[#allocation13 + $0xa0] sm:$0xff]
    %v1214 = vld [vmem:[#allocation13 + $0xa8] sm:$0xff]
    %v1215 = vld [vmem:[#allocation13 + $0xb0] sm:$0xff]
    %v1216 = vld [vmem:[#allocation13 + $0xb8] sm:$0xff]
    %v1217 = vld [vmem:[#allocation13 + $0xc0] sm:$0xff]
    %v1218 = vld [vmem:[#allocation13 + $0xc8] sm:$0xff]
    %v1219 = vld [vmem:[#allocation13 + $0xd0] sm:$0xff]
    %v1220 = vld [vmem:[#allocation13 + $0xd8] sm:$0xff]
    %v1221 = vld [vmem:[#allocation13 + $0xe0] sm:$0xff]
    %v1222 = vld [vmem:[#allocation13 + $0xe8] sm:$0xff]
    %v1223 = vld [vmem:[#allocation13 + $0xf0] sm:$0xff]
    %v1224 = vld [vmem:[#allocation13 + $0xf8] sm:$0xff]
    %v1225 = vld [vmem:[%s11] sm:$0x3]
    %v1227 = vlaneseq
    %v1228 = vshrl.u32 %v1227, 7
    %v1229 = vsub.s32 0, %v1228
    %v1230 = vrot.slane %v1225, %v1229
    %v1231 = vlaneseq
    %v1232 = vshrl.u32 %v1231, 7
    %v1233 = vsub.s32 1, %v1232
    %v1234 = vrot.slane %v1225, %v1233
    %v1269 = vunpack.c.l.b16 %v1193
    %v1270 = vunpack.c.h.b16 %v1193
    %v1271 = vunpack.c.l.b16 %v1194
    %v1272 = vunpack.c.h.b16 %v1194
    %v1273 = vunpack.c.l.b16 %v1195
    %v1274 = vunpack.c.h.b16 %v1195
    %v1275 = vunpack.c.l.b16 %v1196
    %v1276 = vunpack.c.h.b16 %v1196
    %v1277 = vunpack.c.l.b16 %v1197
    %v1278 = vunpack.c.h.b16 %v1197
    %v1279 = vunpack.c.l.b16 %v1198
    %v1280 = vunpack.c.h.b16 %v1198
    %v1281 = vunpack.c.l.b16 %v1199
    %v1282 = vunpack.c.h.b16 %v1199
    %v1283 = vunpack.c.l.b16 %v1200
    %v1284 = vunpack.c.h.b16 %v1200
    %v1285 = vunpack.c.l.b16 %v1201
    %v1286 = vunpack.c.h.b16 %v1201
    %v1287 = vunpack.c.l.b16 %v1202
    %v1288 = vunpack.c.h.b16 %v1202
    %v1289 = vunpack.c.l.b16 %v1203
    %v1290 = vunpack.c.h.b16 %v1203
    %v1291 = vunpack.c.l.b16 %v1204
    %v1292 = vunpack.c.h.b16 %v1204
    %v1293 = vunpack.c.l.b16 %v1205
    %v1294 = vunpack.c.h.b16 %v1205
    %v1295 = vunpack.c.l.b16 %v1206
    %v1296 = vunpack.c.h.b16 %v1206
    %v1297 = vunpack.c.l.b16 %v1207
    %v1298 = vunpack.c.h.b16 %v1207
    %v1299 = vunpack.c.l.b16 %v1208
    %v1300 = vunpack.c.h.b16 %v1208
    %v1301 = vunpack.c.l.b16 %v1209
    %v1302 = vunpack.c.h.b16 %v1209
    %v1303 = vunpack.c.l.b16 %v1210
    %v1304 = vunpack.c.h.b16 %v1210
    %v1305 = vunpack.c.l.b16 %v1211
    %v1306 = vunpack.c.h.b16 %v1211
    %v1307 = vunpack.c.l.b16 %v1212
    %v1308 = vunpack.c.h.b16 %v1212
    %v1309 = vunpack.c.l.b16 %v1213
    %v1310 = vunpack.c.h.b16 %v1213
    %v1311 = vunpack.c.l.b16 %v1214
    %v1312 = vunpack.c.h.b16 %v1214
    %v1313 = vunpack.c.l.b16 %v1215
    %v1314 = vunpack.c.h.b16 %v1215
    %v1315 = vunpack.c.l.b16 %v1216
    %v1316 = vunpack.c.h.b16 %v1216
    %v1317 = vunpack.c.l.b16 %v1217
    %v1318 = vunpack.c.h.b16 %v1217
    %v1319 = vunpack.c.l.b16 %v1218
    %v1320 = vunpack.c.h.b16 %v1218
    %v1321 = vunpack.c.l.b16 %v1219
    %v1322 = vunpack.c.h.b16 %v1219
    %v1323 = vunpack.c.l.b16 %v1220
    %v1324 = vunpack.c.h.b16 %v1220
    %v1325 = vunpack.c.l.b16 %v1221
    %v1326 = vunpack.c.h.b16 %v1221
    %v1327 = vunpack.c.l.b16 %v1222
    %v1328 = vunpack.c.h.b16 %v1222
    %v1329 = vunpack.c.l.b16 %v1223
    %v1330 = vunpack.c.h.b16 %v1223
    %v1331 = vunpack.c.l.b16 %v1224
    %v1332 = vunpack.c.h.b16 %v1224
    %v1333 = vpack.c.b16 %v1271, %v1269
    %v1334 = vpack.c.b16 %v1272, %v1270
    %v1335 = vpack.c.b16 %v1275, %v1273
    %v1336 = vpack.c.b16 %v1276, %v1274
    %v1337 = vpack.c.b16 %v1279, %v1277
    %v1338 = vpack.c.b16 %v1280, %v1278
    %v1339 = vpack.c.b16 %v1283, %v1281
    %v1340 = vpack.c.b16 %v1284, %v1282
    %v1341 = vpack.c.b16 %v1287, %v1285
    %v1342 = vpack.c.b16 %v1288, %v1286
    %v1343 = vpack.c.b16 %v1291, %v1289
    %v1344 = vpack.c.b16 %v1292, %v1290
    %v1345 = vpack.c.b16 %v1295, %v1293
    %v1346 = vpack.c.b16 %v1296, %v1294
    %v1347 = vpack.c.b16 %v1299, %v1297
    %v1348 = vpack.c.b16 %v1300, %v1298
    %v1349 = vpack.c.b16 %v1303, %v1301
    %v1350 = vpack.c.b16 %v1304, %v1302
    %v1351 = vpack.c.b16 %v1307, %v1305
    %v1352 = vpack.c.b16 %v1308, %v1306
    %v1353 = vpack.c.b16 %v1311, %v1309
    %v1354 = vpack.c.b16 %v1312, %v1310
    %v1355 = vpack.c.b16 %v1315, %v1313
    %v1356 = vpack.c.b16 %v1316, %v1314
    %v1357 = vpack.c.b16 %v1319, %v1317
    %v1358 = vpack.c.b16 %v1320, %v1318
    %v1359 = vpack.c.b16 %v1323, %v1321
    %v1360 = vpack.c.b16 %v1324, %v1322
    %v1361 = vpack.c.b16 %v1327, %v1325
    %v1362 = vpack.c.b16 %v1328, %v1326
    %v1363 = vpack.c.b16 %v1331, %v1329
    %v1364 = vpack.c.b16 %v1332, %v1330
    %1397 = vmatprep.subr.bf16.mxu0 %v1348
    %1398 = vmatpush1.bf16.msra.mxu0 %v1347
    %1399 = vmatprep.subr.bf16.mxu0 %v1346
    %1400 = vmatpush1.bf16.msra.mxu0 %v1345
    %1401 = vmatprep.subr.bf16.mxu0 %v1344
    %1402 = vmatpush1.bf16.msra.mxu0 %v1343
    %1403 = vmatprep.subr.bf16.mxu0 %v1342
    %1404 = vmatpush1.bf16.msra.mxu0 %v1341
    %1405 = vmatprep.subr.bf16.mxu0 %v1340
    %1406 = vmatpush1.bf16.msra.mxu0 %v1339
    %1407 = vmatprep.subr.bf16.mxu0 %v1338
    %1408 = vmatpush1.bf16.msra.mxu0 %v1337
    %1409 = vmatprep.subr.bf16.mxu0 %v1336
    %1410 = vmatpush1.bf16.msra.mxu0 %v1335
    %1411 = vmatprep.subr.bf16.mxu0 %v1334
    %1412 = vmatpush1.bf16.msra.mxu0 %v1333
    %1413 = vmatprep.subr.bf16.mxu0 %v1364
    %1414 = vmatpush2.bf16.msra.mxu0 %v1363
    %1415 = vmatprep.subr.bf16.mxu0 %v1362
    %1416 = vmatpush2.bf16.msra.mxu0 %v1361
    %1417 = vmatprep.subr.bf16.mxu0 %v1360
    %1418 = vmatpush2.bf16.msra.mxu0 %v1359
    %1419 = vmatprep.subr.bf16.mxu0 %v1358
    %1420 = vmatpush2.bf16.msra.mxu0 %v1357
    %1421 = vmatprep.subr.bf16.mxu0 %v1356
    %1422 = vmatpush2.bf16.msra.mxu0 %v1355
    %1423 = vmatprep.subr.bf16.mxu0 %v1354
    %1424 = vmatpush2.bf16.msra.mxu0 %v1353
    %1425 = vmatprep.subr.bf16.mxu0 %v1352
    %1426 = vmatpush2.bf16.msra.mxu0 %v1351
    %1427 = vmatprep.subr.bf16.mxu0 %v1350
    %1428 = vmatpush2.bf16.msra.mxu0 %v1349
    %1429 = vmatprep.mubr.bf16.mxu0 %v1192
    %1430 = vmatmul.mubr.bf16.gmra.mxu0 %v1191
    %v1431 = vpop.f32.mrf.mxu0
    %v1432 = vadd.f32 %v1230, %v1431
    %v1433 = vpop.f32.mrf.mxu0
    %v1434 = vadd.f32 %v1234, %v1433
    %v1435 = vpop.f32.mrf.mxu0
    %v1436 = vpop.f32.mrf.mxu0
    %1437 = vdwg.mxu0
    %v1438 = vmax.f32 %v1432, 0.0
    %v1439 = vmax.f32 %v1434, 0.0
    %v1440 = vpack.c.bf16 %v1438, %v1438
    %v1441 = vpack.c.bf16 %v1439, %v1439
    %v1442 = vld [vmem:[#allocation14] sm:$0xff]
    %v1443 = vld [vmem:[#allocation14 + $0x8] sm:$0xff]
    %v1444 = vld [vmem:[#allocation14 + $0x10] sm:$0xff]
    %v1445 = vld [vmem:[#allocation14 + $0x18] sm:$0xff]
    %v1446 = vld [vmem:[#allocation14 + $0x20] sm:$0xff]
    %v1447 = vld [vmem:[#allocation14 + $0x28] sm:$0xff]
    %v1448 = vld [vmem:[#allocation14 + $0x30] sm:$0xff]
    %v1449 = vld [vmem:[#allocation14 + $0x38] sm:$0xff]
    %v1450 = vld [vmem:[#allocation14 + $0x40] sm:$0xff]
    %v1451 = vld [vmem:[#allocation14 + $0x48] sm:$0xff]
    %v1452 = vld [vmem:[#allocation14 + $0x50] sm:$0xff]
    %v1453 = vld [vmem:[#allocation14 + $0x58] sm:$0xff]
    %v1454 = vld [vmem:[#allocation14 + $0x60] sm:$0xff]
    %v1455 = vld [vmem:[#allocation14 + $0x68] sm:$0xff]
    %v1456 = vld [vmem:[#allocation14 + $0x70] sm:$0xff]
    %v1457 = vld [vmem:[#allocation14 + $0x78] sm:$0xff]
    %v1458 = vld [vmem:[#allocation14 + $0x80] sm:$0xff]
    %v1459 = vld [vmem:[#allocation14 + $0x88] sm:$0xff]
    %v1460 = vld [vmem:[#allocation14 + $0x90] sm:$0xff]
    %v1461 = vld [vmem:[#allocation14 + $0x98] sm:$0xff]
    %v1462 = vld [vmem:[#allocation14 + $0xa0] sm:$0xff]
    %v1463 = vld [vmem:[#allocation14 + $0xa8] sm:$0xff]
    %v1464 = vld [vmem:[#allocation14 + $0xb0] sm:$0xff]
    %v1465 = vld [vmem:[#allocation14 + $0xb8] sm:$0xff]
    %v1466 = vld [vmem:[#allocation14 + $0xc0] sm:$0xff]
    %v1467 = vld [vmem:[#allocation14 + $0xc8] sm:$0xff]
    %v1468 = vld [vmem:[#allocation14 + $0xd0] sm:$0xff]
    %v1469 = vld [vmem:[#allocation14 + $0xd8] sm:$0xff]
    %v1470 = vld [vmem:[#allocation14 + $0xe0] sm:$0xff]
    %v1471 = vld [vmem:[#allocation14 + $0xe8] sm:$0xff]
    %v1472 = vld [vmem:[#allocation14 + $0xf0] sm:$0xff]
    %v1473 = vld [vmem:[#allocation14 + $0xf8] sm:$0xff]
    %v1474 = vld [vmem:[%s13] sm:$0x3]
    %v1476 = vlaneseq
    %v1477 = vshrl.u32 %v1476, 7
    %v1478 = vsub.s32 0, %v1477
    %v1479 = vrot.slane %v1474, %v1478
    %v1480 = vlaneseq
    %v1481 = vshrl.u32 %v1480, 7
    %v1482 = vsub.s32 1, %v1481
    %v1483 = vrot.slane %v1474, %v1482
    %v1518 = vunpack.c.l.b16 %v1442
    %v1519 = vunpack.c.h.b16 %v1442
    %v1520 = vunpack.c.l.b16 %v1443
    %v1521 = vunpack.c.h.b16 %v1443
    %v1522 = vunpack.c.l.b16 %v1444
    %v1523 = vunpack.c.h.b16 %v1444
    %v1524 = vunpack.c.l.b16 %v1445
    %v1525 = vunpack.c.h.b16 %v1445
    %v1526 = vunpack.c.l.b16 %v1446
    %v1527 = vunpack.c.h.b16 %v1446
    %v1528 = vunpack.c.l.b16 %v1447
    %v1529 = vunpack.c.h.b16 %v1447
    %v1530 = vunpack.c.l.b16 %v1448
    %v1531 = vunpack.c.h.b16 %v1448
    %v1532 = vunpack.c.l.b16 %v1449
    %v1533 = vunpack.c.h.b16 %v1449
    %v1534 = vunpack.c.l.b16 %v1450
    %v1535 = vunpack.c.h.b16 %v1450
    %v1536 = vunpack.c.l.b16 %v1451
    %v1537 = vunpack.c.h.b16 %v1451
    %v1538 = vunpack.c.l.b16 %v1452
    %v1539 = vunpack.c.h.b16 %v1452
    %v1540 = vunpack.c.l.b16 %v1453
    %v1541 = vunpack.c.h.b16 %v1453
    %v1542 = vunpack.c.l.b16 %v1454
    %v1543 = vunpack.c.h.b16 %v1454
    %v1544 = vunpack.c.l.b16 %v1455
    %v1545 = vunpack.c.h.b16 %v1455
    %v1546 = vunpack.c.l.b16 %v1456
    %v1547 = vunpack.c.h.b16 %v1456
    %v1548 = vunpack.c.l.b16 %v1457
    %v1549 = vunpack.c.h.b16 %v1457
    %v1550 = vunpack.c.l.b16 %v1458
    %v1551 = vunpack.c.h.b16 %v1458
    %v1552 = vunpack.c.l.b16 %v1459
    %v1553 = vunpack.c.h.b16 %v1459
    %v1554 = vunpack.c.l.b16 %v1460
    %v1555 = vunpack.c.h.b16 %v1460
    %v1556 = vunpack.c.l.b16 %v1461
    %v1557 = vunpack.c.h.b16 %v1461
    %v1558 = vunpack.c.l.b16 %v1462
    %v1559 = vunpack.c.h.b16 %v1462
    %v1560 = vunpack.c.l.b16 %v1463
    %v1561 = vunpack.c.h.b16 %v1463
    %v1562 = vunpack.c.l.b16 %v1464
    %v1563 = vunpack.c.h.b16 %v1464
    %v1564 = vunpack.c.l.b16 %v1465
    %v1565 = vunpack.c.h.b16 %v1465
    %v1566 = vunpack.c.l.b16 %v1466
    %v1567 = vunpack.c.h.b16 %v1466
    %v1568 = vunpack.c.l.b16 %v1467
    %v1569 = vunpack.c.h.b16 %v1467
    %v1570 = vunpack.c.l.b16 %v1468
    %v1571 = vunpack.c.h.b16 %v1468
    %v1572 = vunpack.c.l.b16 %v1469
    %v1573 = vunpack.c.h.b16 %v1469
    %v1574 = vunpack.c.l.b16 %v1470
    %v1575 = vunpack.c.h.b16 %v1470
    %v1576 = vunpack.c.l.b16 %v1471
    %v1577 = vunpack.c.h.b16 %v1471
    %v1578 = vunpack.c.l.b16 %v1472
    %v1579 = vunpack.c.h.b16 %v1472
    %v1580 = vunpack.c.l.b16 %v1473
    %v1581 = vunpack.c.h.b16 %v1473
    %v1582 = vpack.c.b16 %v1520, %v1518
    %v1583 = vpack.c.b16 %v1521, %v1519
    %v1584 = vpack.c.b16 %v1524, %v1522
    %v1585 = vpack.c.b16 %v1525, %v1523
    %v1586 = vpack.c.b16 %v1528, %v1526
    %v1587 = vpack.c.b16 %v1529, %v1527
    %v1588 = vpack.c.b16 %v1532, %v1530
    %v1589 = vpack.c.b16 %v1533, %v1531
    %v1590 = vpack.c.b16 %v1536, %v1534
    %v1591 = vpack.c.b16 %v1537, %v1535
    %v1592 = vpack.c.b16 %v1540, %v1538
    %v1593 = vpack.c.b16 %v1541, %v1539
    %v1594 = vpack.c.b16 %v1544, %v1542
    %v1595 = vpack.c.b16 %v1545, %v1543
    %v1596 = vpack.c.b16 %v1548, %v1546
    %v1597 = vpack.c.b16 %v1549, %v1547
    %v1598 = vpack.c.b16 %v1552, %v1550
    %v1599 = vpack.c.b16 %v1553, %v1551
    %v1600 = vpack.c.b16 %v1556, %v1554
    %v1601 = vpack.c.b16 %v1557, %v1555
    %v1602 = vpack.c.b16 %v1560, %v1558
    %v1603 = vpack.c.b16 %v1561, %v1559
    %v1604 = vpack.c.b16 %v1564, %v1562
    %v1605 = vpack.c.b16 %v1565, %v1563
    %v1606 = vpack.c.b16 %v1568, %v1566
    %v1607 = vpack.c.b16 %v1569, %v1567
    %v1608 = vpack.c.b16 %v1572, %v1570
    %v1609 = vpack.c.b16 %v1573, %v1571
    %v1610 = vpack.c.b16 %v1576, %v1574
    %v1611 = vpack.c.b16 %v1577, %v1575
    %v1612 = vpack.c.b16 %v1580, %v1578
    %v1613 = vpack.c.b16 %v1581, %v1579
    %1646 = vmatprep.subr.bf16.mxu0 %v1597
    %1647 = vmatpush1.bf16.msra.mxu0 %v1596
    %1648 = vmatprep.subr.bf16.mxu0 %v1595
    %1649 = vmatpush1.bf16.msra.mxu0 %v1594
    %1650 = vmatprep.subr.bf16.mxu0 %v1593
    %1651 = vmatpush1.bf16.msra.mxu0 %v1592
    %1652 = vmatprep.subr.bf16.mxu0 %v1591
    %1653 = vmatpush1.bf16.msra.mxu0 %v1590
    %1654 = vmatprep.subr.bf16.mxu0 %v1589
    %1655 = vmatpush1.bf16.msra.mxu0 %v1588
    %1656 = vmatprep.subr.bf16.mxu0 %v1587
    %1657 = vmatpush1.bf16.msra.mxu0 %v1586
    %1658 = vmatprep.subr.bf16.mxu0 %v1585
    %1659 = vmatpush1.bf16.msra.mxu0 %v1584
    %1660 = vmatprep.subr.bf16.mxu0 %v1583
    %1661 = vmatpush1.bf16.msra.mxu0 %v1582
    %1662 = vmatprep.subr.bf16.mxu0 %v1613
    %1663 = vmatpush2.bf16.msra.mxu0 %v1612
    %1664 = vmatprep.subr.bf16.mxu0 %v1611
    %1665 = vmatpush2.bf16.msra.mxu0 %v1610
    %1666 = vmatprep.subr.bf16.mxu0 %v1609
    %1667 = vmatpush2.bf16.msra.mxu0 %v1608
    %1668 = vmatprep.subr.bf16.mxu0 %v1607
    %1669 = vmatpush2.bf16.msra.mxu0 %v1606
    %1670 = vmatprep.subr.bf16.mxu0 %v1605
    %1671 = vmatpush2.bf16.msra.mxu0 %v1604
    %1672 = vmatprep.subr.bf16.mxu0 %v1603
    %1673 = vmatpush2.bf16.msra.mxu0 %v1602
    %1674 = vmatprep.subr.bf16.mxu0 %v1601
    %1675 = vmatpush2.bf16.msra.mxu0 %v1600
    %1676 = vmatprep.subr.bf16.mxu0 %v1599
    %1677 = vmatpush2.bf16.msra.mxu0 %v1598
    %1678 = vmatprep.mubr.bf16.mxu0 %v1441
    %1679 = vmatmul.mubr.bf16.gmra.mxu0 %v1440
    %v1680 = vpop.f32.mrf.mxu0
    %v1681 = vadd.f32 %v1479, %v1680
    %v1682 = vpop.f32.mrf.mxu0
    %v1683 = vadd.f32 %v1483, %v1682
    %v1684 = vpop.f32.mrf.mxu0
    %v1685 = vpop.f32.mrf.mxu0
    %1686 = vdwg.mxu0
    %v1687 = vld [vmem:[#allocation5] sm:$0x3]
    %v1688 = vunpack.c.l.bf16 %v1687
    %v1691 = vunpack.c.l.s4 1983009808
    %v1692 = vunpack.c.0.s8 %v1691
    %v1693 = vlaneseq
    %v1694 = vshrl.u32 %v1693, 7
    %v1695 = vsub.s32 %v1692, %v1694
    %v1696 = vrot.slane %v1688, %v1695
    %v1697 = vcombine.high %v1696, %v1696
    %v1700 = vmul.f32 %v1681, %v1696
    %v1701 = vmul.f32 %v1683, %v1697
    %v1702 = vmax.f32 %v1700, 0.0
    %v1703 = vmax.f32 %v1701, 0.0
    %v1704 = vpack.c.bf16 %v1702, %v1702
    %v1705 = vpack.c.bf16 %v1703, %v1703
    %v1706 = vld [vmem:[#allocation16] sm:$0xf]
    %v1707 = vld [vmem:[#allocation16 + $0x4] sm:$0xf]
    %v1708 = vld [vmem:[#allocation16 + $0x8] sm:$0xf]
    %v1709 = vld [vmem:[#allocation16 + $0xc] sm:$0xf]
    %v1710 = vld [vmem:[#allocation16 + $0x10] sm:$0xf]
    %v1711 = vld [vmem:[#allocation16 + $0x14] sm:$0xf]
    %v1712 = vld [vmem:[#allocation16 + $0x18] sm:$0xf]
    %v1713 = vld [vmem:[#allocation16 + $0x1c] sm:$0xf]
    %v1714 = vld [vmem:[#allocation16 + $0x20] sm:$0xf]
    %v1715 = vld [vmem:[#allocation16 + $0x24] sm:$0xf]
    %v1716 = vld [vmem:[#allocation16 + $0x28] sm:$0xf]
    %v1717 = vld [vmem:[#allocation16 + $0x2c] sm:$0xf]
    %v1718 = vld [vmem:[#allocation16 + $0x30] sm:$0xf]
    %v1719 = vld [vmem:[#allocation16 + $0x34] sm:$0xf]
    %v1720 = vld [vmem:[#allocation16 + $0x38] sm:$0xf]
    %v1721 = vld [vmem:[#allocation16 + $0x3c] sm:$0xf]
    %v1722 = vld [vmem:[#allocation16 + $0x40] sm:$0xf]
    %v1723 = vld [vmem:[#allocation16 + $0x44] sm:$0xf]
    %v1724 = vld [vmem:[#allocation16 + $0x48] sm:$0xf]
    %v1725 = vld [vmem:[#allocation16 + $0x4c] sm:$0xf]
    %v1726 = vld [vmem:[#allocation16 + $0x50] sm:$0xf]
    %v1727 = vld [vmem:[#allocation16 + $0x54] sm:$0xf]
    %v1728 = vld [vmem:[#allocation16 + $0x58] sm:$0xf]
    %v1729 = vld [vmem:[#allocation16 + $0x5c] sm:$0xf]
    %v1730 = vld [vmem:[#allocation16 + $0x60] sm:$0xf]
    %v1731 = vld [vmem:[#allocation16 + $0x64] sm:$0xf]
    %v1732 = vld [vmem:[#allocation16 + $0x68] sm:$0xf]
    %v1733 = vld [vmem:[#allocation16 + $0x6c] sm:$0xf]
    %v1734 = vld [vmem:[#allocation16 + $0x70] sm:$0xf]
    %v1735 = vld [vmem:[#allocation16 + $0x74] sm:$0xf]
    %v1736 = vld [vmem:[#allocation16 + $0x78] sm:$0xf]
    %v1737 = vld [vmem:[#allocation16 + $0x7c] sm:$0xf]
    %v1738 = vld [vmem:[%s15] sm:$0x1]
    %v1740 = vlaneseq
    %v1741 = vshrl.u32 %v1740, 7
    %v1742 = vsub.s32 0, %v1741
    %v1743 = vrot.slane %v1738, %v1742
    %v1777 = vunpack.c.l.b16 %v1706
    %v1778 = vunpack.c.l.b16 %v1707
    %v1779 = vunpack.c.l.b16 %v1708
    %v1780 = vunpack.c.l.b16 %v1709
    %v1781 = vunpack.c.l.b16 %v1710
    %v1782 = vunpack.c.l.b16 %v1711
    %v1783 = vunpack.c.l.b16 %v1712
    %v1784 = vunpack.c.l.b16 %v1713
    %v1785 = vunpack.c.l.b16 %v1714
    %v1786 = vunpack.c.l.b16 %v1715
    %v1787 = vunpack.c.l.b16 %v1716
    %v1788 = vunpack.c.l.b16 %v1717
    %v1789 = vunpack.c.l.b16 %v1718
    %v1790 = vunpack.c.l.b16 %v1719
    %v1791 = vunpack.c.l.b16 %v1720
    %v1792 = vunpack.c.l.b16 %v1721
    %v1793 = vunpack.c.l.b16 %v1722
    %v1794 = vunpack.c.l.b16 %v1723
    %v1795 = vunpack.c.l.b16 %v1724
    %v1796 = vunpack.c.l.b16 %v1725
    %v1797 = vunpack.c.l.b16 %v1726
    %v1798 = vunpack.c.l.b16 %v1727
    %v1799 = vunpack.c.l.b16 %v1728
    %v1800 = vunpack.c.l.b16 %v1729
    %v1801 = vunpack.c.l.b16 %v1730
    %v1802 = vunpack.c.l.b16 %v1731
    %v1803 = vunpack.c.l.b16 %v1732
    %v1804 = vunpack.c.l.b16 %v1733
    %v1805 = vunpack.c.l.b16 %v1734
    %v1806 = vunpack.c.l.b16 %v1735
    %v1807 = vunpack.c.l.b16 %v1736
    %v1808 = vunpack.c.l.b16 %v1737
    %v1809 = vpack.c.b16 %v1778, %v1777
    %v1810 = vpack.c.b16 %v1780, %v1779
    %v1811 = vpack.c.b16 %v1782, %v1781
    %v1812 = vpack.c.b16 %v1784, %v1783
    %v1813 = vpack.c.b16 %v1786, %v1785
    %v1814 = vpack.c.b16 %v1788, %v1787
    %v1815 = vpack.c.b16 %v1790, %v1789
    %v1816 = vpack.c.b16 %v1792, %v1791
    %v1817 = vpack.c.b16 %v1794, %v1793
    %v1818 = vpack.c.b16 %v1796, %v1795
    %v1819 = vpack.c.b16 %v1798, %v1797
    %v1820 = vpack.c.b16 %v1800, %v1799
    %v1821 = vpack.c.b16 %v1802, %v1801
    %v1822 = vpack.c.b16 %v1804, %v1803
    %v1823 = vpack.c.b16 %v1806, %v1805
    %v1824 = vpack.c.b16 %v1808, %v1807
    %1841 = vmatprep.subr.bf16.mxu0 0
    %1842 = vmatpush1.bf16.msra.mxu0 %v1816
    %1843 = vmatprep.subr.bf16.mxu0 0
    %1844 = vmatpush1.bf16.msra.mxu0 %v1815
    %1845 = vmatprep.subr.bf16.mxu0 0
    %1846 = vmatpush1.bf16.msra.mxu0 %v1814
    %1847 = vmatprep.subr.bf16.mxu0 0
    %1848 = vmatpush1.bf16.msra.mxu0 %v1813
    %1849 = vmatprep.subr.bf16.mxu0 0
    %1850 = vmatpush1.bf16.msra.mxu0 %v1812
    %1851 = vmatprep.subr.bf16.mxu0 0
    %1852 = vmatpush1.bf16.msra.mxu0 %v1811
    %1853 = vmatprep.subr.bf16.mxu0 0
    %1854 = vmatpush1.bf16.msra.mxu0 %v1810
    %1855 = vmatprep.subr.bf16.mxu0 0
    %1856 = vmatpush1.bf16.msra.mxu0 %v1809
    %1857 = vmatprep.subr.bf16.mxu0 0
    %1858 = vmatpush2.bf16.msra.mxu0 %v1824
    %1859 = vmatprep.subr.bf16.mxu0 0
    %1860 = vmatpush2.bf16.msra.mxu0 %v1823
    %1861 = vmatprep.subr.bf16.mxu0 0
    %1862 = vmatpush2.bf16.msra.mxu0 %v1822
    %1863 = vmatprep.subr.bf16.mxu0 0
    %1864 = vmatpush2.bf16.msra.mxu0 %v1821
    %1865 = vmatprep.subr.bf16.mxu0 0
    %1866 = vmatpush2.bf16.msra.mxu0 %v1820
    %1867 = vmatprep.subr.bf16.mxu0 0
    %1868 = vmatpush2.bf16.msra.mxu0 %v1819
    %1869 = vmatprep.subr.bf16.mxu0 0
    %1870 = vmatpush2.bf16.msra.mxu0 %v1818
    %1871 = vmatprep.subr.bf16.mxu0 0
    %1872 = vmatpush2.bf16.msra.mxu0 %v1817
    %1873 = vmatprep.mubr.bf16.mxu0 %v1705
    %1874 = vmatmul.mubr.bf16.gmra.mxu0 %v1704
    %v1875 = vpop.f32.mrf.mxu0
    %v1876 = vadd.f32 %v1743, %v1875
    %v1877 = vpop.f32.mrf.mxu0
    %v1878 = vpop.f32.mrf.mxu0
    %v1879 = vpop.f32.mrf.mxu0
    %1880 = vdwg.mxu0
    %1881 = vst [vmem:[#allocation17] sm:$0x3] %v1876
    // Predicated region
    $region102: #{tpu_custom_call.1} parent=1 // pred_check
      _
    $region103: #{tpu_custom_call.1} parent=1 // pred_check_branch
      %1883 = sbr.rel (0) target = $region105
    $region104: #{tpu_custom_call.1} parent=1 // pred_region
      %s1885 = ssub.s32 32, 32
      %1886 = vsyncadd [#allocation4], %s1885
      %s1888 = sshll.u32 [#allocation17], 4
      %s1889 = int_to_ptr.vmem [resolvable:$true] %s1888
      %1891 = dma.vmem_to_hbm [thread:$0]  %s1889, 32, %s16, [#allocation4]
    $region105: #{tpu_custom_call.1} parent=1 // pred_fallthru
      _
    // Predicated region
    $region106: #{tpu_custom_call.1} parent=1 // pred_check
      _
    $region107: #{tpu_custom_call.1} parent=1 // pred_check_branch
      %1893 = sbr.rel (0) target = $region109
    $region108: #{tpu_custom_call.1} parent=1 // pred_region
      %1894 = dma.done [#allocation4], 32
    $region109: #{tpu_custom_call.1} parent=1 // pred_fallthru
      _
    %1895 = vsyncpa [#allocation3], 1
    %1896 = vsyncpa [#allocation6], 1
    %1897 = vsyncpa [#allocation9], 1
    %1898 = vsyncpa [#allocation12], 1
    %1899 = vsyncpa [#allocation15], 1
    %1900 = vsyncpa [#allocation4], 1

</llo_original>
